<compile_context>
chip_gen: v7x
topology: tpu7x:2x2x1
jax: 0.10.0
libtpu: 0.0.40
codegen_flags: <defaults>
</compile_context>

<pallas_src>
from functools import partial, lru_cache

import numpy as np
import jax
import jax.numpy as jnp
from jax.experimental import pallas as pl
from jax.experimental.pallas import tpu as pltpu


# ----------------------------- static filter setup ------------------------------

_BINOMIAL = {
    1: [1.0],
    2: [1.0, 1.0],
    3: [1.0, 2.0, 1.0],
    4: [1.0, 3.0, 3.0, 1.0],
    5: [1.0, 4.0, 6.0, 4.0, 1.0],
    6: [1.0, 5.0, 10.0, 10.0, 5.0, 1.0],
    7: [1.0, 6.0, 15.0, 20.0, 15.0, 6.0, 1.0],
}


def _pad_sizes(filt_size: int, pad_off: int):
    left = int(1.0 * (filt_size - 1) / 2)
    right = int(np.ceil(1.0 * (filt_size - 1) / 2))
    return (left + pad_off, right + pad_off, left + pad_off, right + pad_off)


def _build_blur_matrices(H, W, filt_size, stride, pad_off, pad_type):
    """Fold pad + separable binomial blur + stride into banded matrices A, B."""
    a = np.asarray(_BINOMIAL[filt_size], dtype=np.float64)
    w = a / a.sum()                                    # 1-D weights (exact in f32)

    pad_l, pad_r, pad_t, pad_b = _pad_sizes(filt_size, pad_off)
    if pad_type in ("refl", "reflect"):
        # Mirror PyTorch ReflectionPad2d's constraint (pad < dim); beyond that a
        # single reflection would alias rows silently.
        assert pad_t < H and pad_b < H and pad_l < W and pad_r < W, (
            "reflect pad must be smaller than the spatial dimension")

    Hp, Wp = H + pad_t + pad_b, W + pad_l + pad_r
    Ho = (Hp - filt_size) // stride + 1
    Wo = (Wp - filt_size) // stride + 1

    def src_index(p, pad_before, size):
        s = p - pad_before
        if pad_type in ("refl", "reflect"):
            if s < 0:
                s = -s
            if s >= size:
                s = 2 * (size - 1) - s
            return s
        if pad_type in ("repl", "replicate"):
            return min(max(s, 0), size - 1)
        # 'zero' padding: out-of-range taps contribute nothing
        return s if 0 <= s < size else None

    A = np.zeros((Ho, H), np.float64)
    for i in range(Ho):
        for u in range(filt_size):
            s = src_index(stride * i + u, pad_t, H)
            if s is not None:
                A[i, s] += w[u]

    B = np.zeros((W, Wo), np.float64)
    for j in range(Wo):
        for v in range(filt_size):
            s = src_index(stride * j + v, pad_l, W)
            if s is not None:
                B[s, j] += w[v]

    return A.astype(np.float32), B.astype(np.float32), Ho, Wo


@lru_cache(maxsize=None)
def _cached_blur_matrices(H, W, filt_size, stride, pad_off, pad_type):
    """Device-resident A/B, built once per (H, W, filter) configuration."""
    A, B, Ho, Wo = _build_blur_matrices(H, W, filt_size, stride, pad_off, pad_type)
    return jnp.asarray(A), jnp.asarray(B), Ho, Wo


# ------------------------------ VMEM / tile sizing -------------------------------

def _vmem_budget_bytes():
    """Generation-aware VMEM limit: ~3/4 of physical, capped at 96 MiB."""
    try:
        cap = int(pltpu.get_tpu_info().vmem_capacity_bytes)
    except Exception:
        cap = 64 * 1024 * 1024          # conservative fallback (v7x per-TC)
    return max(32 * 1024 * 1024, min((cap * 3) // 4, 96 * 1024 * 1024))


def _pick_nc_tile(NC, per_channel_bytes, block_budget_bytes, max_tile=64):
    """Largest divisor of NC fitting the block budget; prefer >=2, even grid."""
    cap = max(1, min(max_tile, block_budget_bytes // max(per_channel_bytes, 1)))
    divisors = [d for d in range(1, NC + 1) if NC % d == 0 and d <= cap]
    even = [d for d in divisors if (NC // d) >= 2 and (NC // d) % 2 == 0]
    ge2 = [d for d in divisors if NC // d >= 2]
    if even:                       # balanced across v7x's two TensorCores
        return max(even)
    if ge2:
        return max(ge2)
    return max(divisors)


# --------------------------------- Pallas kernel ---------------------------------

def _make_kernel(nc_tile, H, W, Ho, Wo):
    def kernel(xr_ref, xi_ref, a_ref, b_ref, or_ref, oi_ref, t_ref):
        # xr_ref/xi_ref: (nc_tile, H, W)   raw (unpadded) input planes
        # a_ref: (Ho, H) f32   vertical blur (+ pad + stride) matrix
        # b_ref: (W, Wo) f32   horizontal blur (+ pad + stride) matrix
        # or_ref/oi_ref: (nc_tile, Ho, Wo)
        # t_ref: VMEM scratch (nc_tile, H, Wo) f32 intermediate
        A = a_ref[...]
        B = b_ref[...]

        def lowpass(x_ref, o_ref):
            # Horizontal pass: ONE big-M matmul over all channels of the block.
            x2 = x_ref[...].reshape(nc_tile * H, W)
            t = jnp.dot(x2, B, preferred_element_type=jnp.float32,
                        precision=jax.lax.Precision.HIGHEST)       # (nc*H, Wo)
            t_ref[...] = t.reshape(nc_tile, H, Wo)

            # Vertical pass: small per-channel matmul, live ranges bounded by
            # the fori_loop (dynamic ref indexing along the leading axis).
            def body(c, carry):
                o_ref[c] = jnp.dot(
                    A, t_ref[c], preferred_element_type=jnp.float32,
                    precision=jax.lax.Precision.HIGHEST).astype(o_ref.dtype)
                return carry

            jax.lax.fori_loop(0, nc_tile, body, 0)

        lowpass(xr_ref, or_ref)
        lowpass(xi_ref, oi_ref)

    return kernel


@partial(jax.jit, static_argnames=("nc_tile", "vmem_limit_bytes"))
def _lowpass_pair_pallas(xr, xi, A, B, *, nc_tile, vmem_limit_bytes):
    NC, H, W = xr.shape
    Ho, Wo = A.shape[0], B.shape[1]
    kernel = _make_kernel(nc_tile, H, W, Ho, Wo)

    x_spec = pl.BlockSpec((nc_tile, H, W), lambda i: (i, 0, 0))
    o_spec = pl.BlockSpec((nc_tile, Ho, Wo), lambda i: (i, 0, 0))

    return pl.pallas_call(
        kernel,
        out_shape=(jax.ShapeDtypeStruct((NC, Ho, Wo), xr.dtype),
                   jax.ShapeDtypeStruct((NC, Ho, Wo), xi.dtype)),
        grid=(NC // nc_tile,),
        in_specs=[
            x_spec,                                   # real planes
            x_spec,                                   # imaginary planes
            pl.BlockSpec((Ho, H), lambda i: (0, 0)),  # A: resident across grid
            pl.BlockSpec((W, Wo), lambda i: (0, 0)),  # B: resident across grid
        ],
        out_specs=(o_spec, o_spec),
        scratch_shapes=[pltpu.VMEM((nc_tile, H, Wo), jnp.float32)],
        compiler_params=pltpu.CompilerParams(
            dimension_semantics=("parallel",),
            vmem_limit_bytes=vmem_limit_bytes,
        ),
    )(xr, xi, A, B)


# -------------------------------- forward wrappers --------------------------------

def complex_lowpass_forward(x_r, x_i, *, pad_type="reflect", filt_size=4, stride=2,
                            pad_off=0):
    """ComplexLowpass.forward: independent lowpass of real and imaginary parts.

    Both (N, C, H, W) inputs are filtered in one fused pallas_call.
    """
    assert x_r.shape == x_i.shape, "real/imag inputs must share a shape"
    N, C, H, W = x_r.shape
    A, B, Ho, Wo = _cached_blur_matrices(H, W, filt_size, stride, pad_off, pad_type)
    NC = N * C

    itemsize = np.dtype(x_r.dtype).itemsize
    vmem_budget = _vmem_budget_bytes()
    # Per-channel VMEM footprint of one grid step (double-buffered in/out + scratch).
    per_ch = (2 * 2 * H * W * itemsize        # xr + xi input blocks, 2 buffers each
              + 2 * 2 * Ho * Wo * itemsize    # or + oi output blocks, 2 buffers each
              + H * Wo * 4)                   # f32 intermediate scratch (1 buffer)
    nc_tile = _pick_nc_tile(NC, per_ch, block_budget_bytes=vmem_budget // 2)

    xr_flat = x_r.reshape(NC, H, W)           # free, contiguous views
    xi_flat = x_i.reshape(NC, H, W)
    or_flat, oi_flat = _lowpass_pair_pallas(
        xr_flat, xi_flat, A, B, nc_tile=nc_tile, vmem_limit_bytes=vmem_budget)
    return or_flat.reshape(N, C, Ho, Wo), oi_flat.reshape(N, C, Ho, Wo)


# --------------------------------- reference (JAX) ---------------------------------

def _reference_blur(x, *, pad_type="reflect", filt_size=4, stride=2, pad_off=0):
    """Exact elementwise reference: pad + 16-tap weighted sum, plain JAX (VPU f32)."""
    N, C, H, W = x.shape
    pad_l, pad_r, pad_t, pad_b = _pad_sizes(filt_size, pad_off)
    mode = {"reflect": "reflect", "refl": "reflect",
            "repl": "edge", "replicate": "edge", "zero": "constant"}[pad_type]
    xp = jnp.pad(x, ((0, 0), (0, 0), (pad_t, pad_b), (pad_l, pad_r)), mode=mode)

    a = np.asarray(_BINOMIAL[filt_size], dtype=np.float64)
    f2 = a[:, None] * a[None, :]
    f2 = (f2 / f2.sum()).astype(np.float32)

    Hp, Wp = H + pad_t + pad_b, W + pad_l + pad_r
    Ho = (Hp - filt_size) // stride + 1
    Wo = (Wp - filt_size) // stride + 1

    out = jnp.zeros((N, C, Ho, Wo), jnp.float32)
    for u in range(filt_size):
        for v in range(filt_size):
            patch = xp[:, :, u:u + stride * (Ho - 1) + 1:stride,
                              v:v + stride * (Wo - 1) + 1:stride]
            out = out + f2[u, v] * patch
    return out.astype(x.dtype)


# --------------------------------------- main ---------------------------------------

if __name__ == "__main__":
    key = jax.random.PRNGKey(0)
    kr, ki = jax.random.split(key)
    N, C, H, W = 2, 4, 16, 16
    x_r = jax.random.normal(kr, (N, C, H, W), dtype=jnp.float32)
    x_i = jax.random.normal(ki, (N, C, H, W), dtype=jnp.float32)

    out_r, out_i = complex_lowpass_forward(x_r, x_i)
    out_r, out_i = jax.block_until_ready((out_r, out_i))

    ref_r = _reference_blur(x_r)
    ref_i = _reference_blur(x_i)

    assert out_r.shape == (N, C, 8, 8), out_r.shape
    assert out_i.shape == (N, C, 8, 8), out_i.shape
    assert jnp.allclose(out_r, ref_r, atol=1e-5, rtol=1e-5), \
        f"real: max abs diff {jnp.max(jnp.abs(out_r - ref_r))}"
    assert jnp.allclose(out_i, ref_i, atol=1e-5, rtol=1e-5), \
        f"imag: max abs diff {jnp.max(jnp.abs(out_i - ref_i))}"

    print("KERNEL_OK")
</pallas_src>

<mosaic_0001>
module attributes {stable_mosaic.version = 11 : i64} {
  func.func @kernel(%arg0: i32, %arg1: memref<4x16x16xf32, #tpu.memory_space<vmem>>, %arg2: memref<4x16x16xf32, #tpu.memory_space<vmem>>, %arg3: memref<8x16xf32, #tpu.memory_space<vmem>>, %arg4: memref<16x8xf32, #tpu.memory_space<vmem>>, %arg5: memref<4x8x8xf32, #tpu.memory_space<vmem>>, %arg6: memref<4x8x8xf32, #tpu.memory_space<vmem>>, %arg7: memref<4x16x8xf32, #tpu.memory_space<vmem>>) attributes {dimension_semantics = [#tpu.dimension_semantics<parallel>], iteration_bounds = array<i64: 2>, scalar_prefetch = 0 : i64, scratch_operands = 1 : i64, tpu.core_type = #tpu.core_type<tc>, window_params = [{transform_indices = @transform_0, window_bounds = array<i64: 4, 16, 16>}, {transform_indices = @transform_1, window_bounds = array<i64: 4, 16, 16>}, {pipeline_mode = #tpu.pipeline_mode<synchronous>, transform_indices = @transform_2, window_bounds = array<i64: 8, 16>}, {pipeline_mode = #tpu.pipeline_mode<synchronous>, transform_indices = @transform_3, window_bounds = array<i64: 16, 8>}, {transform_indices = @transform_4, window_bounds = array<i64: 4, 8, 8>}, {transform_indices = @transform_5, window_bounds = array<i64: 4, 8, 8>}]} {
    %c0 = arith.constant 0 : index
    %c0_0 = arith.constant 0 : index
    %0 = vector.load %arg3[%c0, %c0_0] : memref<8x16xf32, #tpu.memory_space<vmem>>, vector<8x16xf32>
    %c0_1 = arith.constant 0 : index
    %c0_2 = arith.constant 0 : index
    %1 = vector.load %arg4[%c0_1, %c0_2] : memref<16x8xf32, #tpu.memory_space<vmem>>, vector<16x8xf32>
    %c0_3 = arith.constant 0 : index
    %c0_4 = arith.constant 0 : index
    %c0_5 = arith.constant 0 : index
    %2 = vector.load %arg1[%c0_3, %c0_4, %c0_5] : memref<4x16x16xf32, #tpu.memory_space<vmem>>, vector<4x16x16xf32>
    %3 = vector.shape_cast %2 : vector<4x16x16xf32> to vector<64x16xf32>
    %cst = arith.constant dense<0.000000e+00> : vector<64x8xf32>
    %4 = tpu.matmul %3, %1, %cst {dimension_numbers = #tpu.dot_dimension_numbers<[1], [0], [0], [1], [0, 0, 1, 1], [], []>, precision = #tpu.contract_precision<fp32>} : vector<64x16xf32>, vector<16x8xf32>, vector<64x8xf32> -> vector<64x8xf32>
    %5 = vector.shape_cast %4 : vector<64x8xf32> to vector<4x16x8xf32>
    %c0_6 = arith.constant 0 : index
    %c0_7 = arith.constant 0 : index
    %c0_8 = arith.constant 0 : index
    %6 = vector.load %arg7[%c0_6, %c0_7, %c0_8] : memref<4x16x8xf32, #tpu.memory_space<vmem>>, vector<4x16x8xf32>
    tpu.vector_store %arg7[%c0_6, %c0_7, %c0_8], %5 {strides = array<i32>} : memref<4x16x8xf32, #tpu.memory_space<vmem>>, vector<4x16x8xf32>,
    %c0_i32 = arith.constant 0 : i32
    %c4_i32 = arith.constant 4 : i32
    %7 = arith.addi %c0_i32, %c4_i32 : i32
    %c1_i32 = arith.constant 1 : i32
    scf.for %arg8 = %c0_i32 to %7 step %c1_i32  : i32 {
      %14 = arith.index_cast %arg8 : i32 to index
      %c0_21 = arith.constant 0 : index
      %c0_22 = arith.constant 0 : index
      %15 = vector.load %arg7[%14, %c0_21, %c0_22] : memref<4x16x8xf32, #tpu.memory_space<vmem>>, vector<1x16x8xf32>
      %16 = vector.shape_cast %15 : vector<1x16x8xf32> to vector<16x8xf32>
      %cst_23 = arith.constant dense<0.000000e+00> : vector<8x8xf32>
      %17 = tpu.matmul %0, %16, %cst_23 {dimension_numbers = #tpu.dot_dimension_numbers<[1], [0], [0], [1], [0, 0, 1, 1], [], []>, precision = #tpu.contract_precision<fp32>} : vector<8x16xf32>, vector<16x8xf32>, vector<8x8xf32> -> vector<8x8xf32>
      %18 = arith.index_cast %arg8 : i32 to index
      %c0_24 = arith.constant 0 : index
      %c0_25 = arith.constant 0 : index
      %19 = vector.load %arg5[%18, %c0_24, %c0_25] : memref<4x8x8xf32, #tpu.memory_space<vmem>>, vector<1x8x8xf32>
      %20 = vector.shape_cast %19 : vector<1x8x8xf32> to vector<8x8xf32>
      %21 = vector.shape_cast %17 : vector<8x8xf32> to vector<1x8x8xf32>
      tpu.vector_store %arg5[%18, %c0_24, %c0_25], %21 {strides = array<i32>} : memref<4x8x8xf32, #tpu.memory_space<vmem>>, vector<1x8x8xf32>,
    }
    %c4_i32_9 = arith.constant 4 : i32
    %c0_10 = arith.constant 0 : index
    %c0_11 = arith.constant 0 : index
    %c0_12 = arith.constant 0 : index
    %8 = vector.load %arg2[%c0_10, %c0_11, %c0_12] : memref<4x16x16xf32, #tpu.memory_space<vmem>>, vector<4x16x16xf32>
    %9 = vector.shape_cast %8 : vector<4x16x16xf32> to vector<64x16xf32>
    %cst_13 = arith.constant dense<0.000000e+00> : vector<64x8xf32>
    %10 = tpu.matmul %9, %1, %cst_13 {dimension_numbers = #tpu.dot_dimension_numbers<[1], [0], [0], [1], [0, 0, 1, 1], [], []>, precision = #tpu.contract_precision<fp32>} : vector<64x16xf32>, vector<16x8xf32>, vector<64x8xf32> -> vector<64x8xf32>
    %11 = vector.shape_cast %10 : vector<64x8xf32> to vector<4x16x8xf32>
    %c0_14 = arith.constant 0 : index
    %c0_15 = arith.constant 0 : index
    %c0_16 = arith.constant 0 : index
    %12 = vector.load %arg7[%c0_14, %c0_15, %c0_16] : memref<4x16x8xf32, #tpu.memory_space<vmem>>, vector<4x16x8xf32>
    tpu.vector_store %arg7[%c0_14, %c0_15, %c0_16], %11 {strides = array<i32>} : memref<4x16x8xf32, #tpu.memory_space<vmem>>, vector<4x16x8xf32>,
    %c0_i32_17 = arith.constant 0 : i32
    %c4_i32_18 = arith.constant 4 : i32
    %13 = arith.addi %c0_i32_17, %c4_i32_18 : i32
    %c1_i32_19 = arith.constant 1 : i32
    scf.for %arg8 = %c0_i32_17 to %13 step %c1_i32_19  : i32 {
      %14 = arith.index_cast %arg8 : i32 to index
      %c0_21 = arith.constant 0 : index
      %c0_22 = arith.constant 0 : index
      %15 = vector.load %arg7[%14, %c0_21, %c0_22] : memref<4x16x8xf32, #tpu.memory_space<vmem>>, vector<1x16x8xf32>
      %16 = vector.shape_cast %15 : vector<1x16x8xf32> to vector<16x8xf32>
      %cst_23 = arith.constant dense<0.000000e+00> : vector<8x8xf32>
      %17 = tpu.matmul %0, %16, %cst_23 {dimension_numbers = #tpu.dot_dimension_numbers<[1], [0], [0], [1], [0, 0, 1, 1], [], []>, precision = #tpu.contract_precision<fp32>} : vector<8x16xf32>, vector<16x8xf32>, vector<8x8xf32> -> vector<8x8xf32>
      %18 = arith.index_cast %arg8 : i32 to index
      %c0_24 = arith.constant 0 : index
      %c0_25 = arith.constant 0 : index
      %19 = vector.load %arg6[%18, %c0_24, %c0_25] : memref<4x8x8xf32, #tpu.memory_space<vmem>>, vector<1x8x8xf32>
      %20 = vector.shape_cast %19 : vector<1x8x8xf32> to vector<8x8xf32>
      %21 = vector.shape_cast %17 : vector<8x8xf32> to vector<1x8x8xf32>
      tpu.vector_store %arg6[%18, %c0_24, %c0_25], %21 {strides = array<i32>} : memref<4x8x8xf32, #tpu.memory_space<vmem>>, vector<1x8x8xf32>,
    }
    %c4_i32_20 = arith.constant 4 : i32
    return
  }
  func.func @transform_0(%arg0: i32) -> (i32, i32, i32) {
    %c0_i32 = arith.constant 0 : i32
    %c0_i32_0 = arith.constant 0 : i32
    %c0_i32_1 = arith.constant 0 : i32
    return %arg0, %c0_i32, %c0_i32_0 : i32, i32, i32
  }
  func.func @transform_1(%arg0: i32) -> (i32, i32, i32) {
    %c0_i32 = arith.constant 0 : i32
    %c0_i32_0 = arith.constant 0 : i32
    %c0_i32_1 = arith.constant 0 : i32
    return %arg0, %c0_i32, %c0_i32_0 : i32, i32, i32
  }
  func.func @transform_2(%arg0: i32) -> (i32, i32) {
    %c0_i32 = arith.constant 0 : i32
    %c0_i32_0 = arith.constant 0 : i32
    %c0_i32_1 = arith.constant 0 : i32
    return %c0_i32, %c0_i32_0 : i32, i32
  }
  func.func @transform_3(%arg0: i32) -> (i32, i32) {
    %c0_i32 = arith.constant 0 : i32
    %c0_i32_0 = arith.constant 0 : i32
    %c0_i32_1 = arith.constant 0 : i32
    return %c0_i32, %c0_i32_0 : i32, i32
  }
  func.func @transform_4(%arg0: i32) -> (i32, i32, i32) {
    %c0_i32 = arith.constant 0 : i32
    %c0_i32_0 = arith.constant 0 : i32
    %c0_i32_1 = arith.constant 0 : i32
    return %arg0, %c0_i32, %c0_i32_0 : i32, i32, i32
  }
  func.func @transform_5(%arg0: i32) -> (i32, i32, i32) {
    %c0_i32 = arith.constant 0 : i32
    %c0_i32_0 = arith.constant 0 : i32
    %c0_i32_1 = arith.constant 0 : i32
    return %arg0, %c0_i32, %c0_i32_0 : i32, i32, i32
  }
}

</mosaic_0001>

<llo_original>
// kernel: _lowpass_pair_pallas.1
$region0: #{_lowpass_pair_pallas.1}
  #allocation0 [shape = 'u32[]', space=smem, size = 0x4, offset = 0x4, fixed_abs, tag = 'smem constant byte address 0x4 - core index']
  #allocation1 [shape = 'u32[144,128]{1,0:T(1,128)}', space=vmem, size = 0x12000, scoped, tag = 'internal scratch']
  #allocation2 [shape = 'f32[4,16,8]{2,1,0:T(8,128)}', space=vmem, size = 0x8000, scoped, tag = 'scratch operand']
  %s0 = inlined_call_operand.hbm [shape: f32[8,16,16], index: 0, kind: input, shape index: {}]
  %s1 = inlined_call_operand.hbm [shape: f32[8,16,16], index: 1, kind: input, shape index: {}]
  %s2 = inlined_call_operand.vmem [shape: f32[8,16], index: 2, kind: input, shape index: {}]
  %s3 = inlined_call_operand.vmem [shape: f32[16,8], index: 3, kind: input, shape index: {}]
  %s4 = inlined_call_operand.hbm [shape: f32[8,8,8], index: 4, kind: output, shape index: {0}]
  %s5 = inlined_call_operand.hbm [shape: f32[8,8,8], index: 5, kind: output, shape index: {1}]
  %6 = xla_tuple %s4, %s5
  %s7 = sld [smem:[#allocation0]]
  $region79: #{_lowpass_pair_pallas.1} parent=0
    _
  %s9 = ssub.s32 1, %s7
  %s10 = scalar_select 0, %s9, %s7
  $region1: #{_lowpass_pair_pallas.1} parent=0
    #allocation3 [shape = 'u8[65536]{0}', space=vmem, size = 0x10000, scoped, tag = 'input window, operand 0']
    #allocation4 [shape = 's32[2]{0}', space=sflag, size = 0x8, scoped, tag = 'scoped memory for _lowpass_pair_pallas.1']
    #allocation5 [shape = 's32[2]{0}', space=sflag, size = 0x8, scoped, tag = 'scoped memory for _lowpass_pair_pallas.1']
    #allocation6 [shape = 'u8[65536]{0}', space=vmem, size = 0x10000, scoped, tag = 'input window, operand 1']
    #allocation7 [shape = 's32[2]{0}', space=sflag, size = 0x8, scoped, tag = 'scoped memory for _lowpass_pair_pallas.1']
    #allocation8 [shape = 'u8[32768]{0}', space=vmem, size = 0x8000, scoped, tag = 'output window, operand 0']
    #allocation9 [shape = 'u8[32768]{0}', space=vmem, size = 0x8000, scoped, tag = 'output window, operand 1']
    #allocation10 [shape = 's32[2]{0}', space=sflag, size = 0x8, scoped, tag = 'scoped memory for _lowpass_pair_pallas.1']
    %11 = vsyncpa [#allocation4], 0
    %s12 = scalar_lea.sflag [#allocation4], 1
    %13 = vsyncpa %s12, 0
    %14 = vsyncpa [#allocation7], 0
    %s15 = scalar_lea.sflag [#allocation7], 1
    %16 = vsyncpa %s15, 0
    %17 = vsyncpa [#allocation5], 0
    %s18 = scalar_lea.sflag [#allocation5], 1
    %19 = vsyncpa %s18, 0
    %20 = vsyncpa [#allocation10], 0
    %s21 = scalar_lea.sflag [#allocation10], 1
    %22 = vsyncpa %s21, 0
    loop: start=0, step=1, limit=4
    $region2: #{_lowpass_pair_pallas.1} parent=1 // loop_pre_header
      _
    $region3: #{_lowpass_pair_pallas.1} parent=1 // loop_header
      %s24 = sphi 0, %s28
      %p25 = scmp.ge.s32.totalorder %s24, 4
      %s34 = sphi 0, %s36
      %s37 = sphi 0, %s34
      %s38 = sphi 0, %s37
      %s54 = sphi 0, %s38
      %s60 = sphi 0, %s62
      %s63 = sphi 0, %s60
      %s64 = sphi 0, %s63
      %s80 = sphi 0, %s64
      %s84 = sphi 0, %s84
      %s86 = sphi 0, %s84
      %s87 = sphi 0, %s86
      %s101 = sphi 0, %s87
      %s105 = sphi 0, %s105
      %s107 = sphi 0, %s105
      %s108 = sphi 0, %s107
      %s122 = sphi 0, %s108
      %s128 = sphi 0, %s130
      %s131 = sphi 0, %s128
      %s132 = sphi 0, %s131
      %s148 = sphi 0, %s132
      %s154 = sphi 0, %s156
      %s157 = sphi 0, %s154
      %s158 = sphi 0, %s157
      %s174 = sphi 0, %s158
    $region4: #{_lowpass_pair_pallas.1} parent=1 // loop_header_branch
      %27 = sbr.rel (%p25) target = $region8
    $region5: #{_lowpass_pair_pallas.1} parent=1 // loop_body
      %s29 = ssub.s32 %s24, 1
      %s30 = ssub.s32 %s24, 2
      %s31 = sadd.s32 %s24, 1
      %s32 = ssub.s32 %s24, %s31
      %p33 = scmp.eq.s32.totalorder %s32, 0
      %s35 = sadd.s32 %s34, 1
      %s36 = scalar_select %p33, %s34, %s35
      %p39 = pneg %p33
      %p40 = scmp.eq.s32.totalorder %s24, 1
      %p41 = por %p39, %p40
      %p42 = scmp.ne.s32.totalorder %s34, %s37
      %p43 = scmp.eq.s32.totalorder %s24, 0
      %p44 = por %p42, %p43
      %p45 = scmp.ne.s32.totalorder %s34, %s37
      %p46 = scmp.eq.s32.totalorder %s29, 1
      %p47 = por %p45, %p46
      %p48 = scmp.ne.s32.totalorder %s37, %s38
      %p49 = scmp.eq.s32.totalorder %s29, 0
      %p50 = por %p48, %p49
      %p51 = scmp.ne.s32.totalorder %s37, %s38
      %p52 = scmp.eq.s32.totalorder %s30, 1
      %p53 = por %p51, %p52
      %p55 = scmp.ne.s32.totalorder %s38, %s54
      %p56 = scmp.eq.s32.totalorder %s30, 0
      %p57 = por %p55, %p56
      %s58 = ssub.s32 %s24, %s31
      %p59 = scmp.eq.s32.totalorder %s58, 0
      %s61 = sadd.s32 %s60, 1
      %s62 = scalar_select %p59, %s60, %s61
      %p65 = pneg %p59
      %p66 = scmp.eq.s32.totalorder %s24, 1
      %p67 = por %p65, %p66
      %p68 = scmp.ne.s32.totalorder %s60, %s63
      %p69 = scmp.eq.s32.totalorder %s24, 0
      %p70 = por %p68, %p69
      %p71 = scmp.ne.s32.totalorder %s60, %s63
      %p72 = scmp.eq.s32.totalorder %s29, 1
      %p73 = por %p71, %p72
      %p74 = scmp.ne.s32.totalorder %s63, %s64
      %p75 = scmp.eq.s32.totalorder %s29, 0
      %p76 = por %p74, %p75
      %p77 = scmp.ne.s32.totalorder %s63, %s64
      %p78 = scmp.eq.s32.totalorder %s30, 1
      %p79 = por %p77, %p78
      %p81 = scmp.ne.s32.totalorder %s64, %s80
      %p82 = scmp.eq.s32.totalorder %s30, 0
      %p83 = por %p81, %p82
      %s85 = sadd.s32 %s84, 1
      %p88 = scmp.eq.s32.totalorder %s24, 1
      %p89 = scmp.ne.s32.totalorder %s84, %s86
      %p90 = scmp.eq.s32.totalorder %s24, 0
      %p91 = por %p89, %p90
      %p92 = scmp.ne.s32.totalorder %s84, %s86
      %p93 = scmp.eq.s32.totalorder %s29, 1
      %p94 = por %p92, %p93
      %p95 = scmp.ne.s32.totalorder %s86, %s87
      %p96 = scmp.eq.s32.totalorder %s29, 0
      %p97 = por %p95, %p96
      %p98 = scmp.ne.s32.totalorder %s86, %s87
      %p99 = scmp.eq.s32.totalorder %s30, 1
      %p100 = por %p98, %p99
      %p102 = scmp.ne.s32.totalorder %s87, %s101
      %p103 = scmp.eq.s32.totalorder %s30, 0
      %p104 = por %p102, %p103
      %s106 = sadd.s32 %s105, 1
      %p109 = scmp.eq.s32.totalorder %s24, 1
      %p110 = scmp.ne.s32.totalorder %s105, %s107
      %p111 = scmp.eq.s32.totalorder %s24, 0
      %p112 = por %p110, %p111
      %p113 = scmp.ne.s32.totalorder %s105, %s107
      %p114 = scmp.eq.s32.totalorder %s29, 1
      %p115 = por %p113, %p114
      %p116 = scmp.ne.s32.totalorder %s107, %s108
      %p117 = scmp.eq.s32.totalorder %s29, 0
      %p118 = por %p116, %p117
      %p119 = scmp.ne.s32.totalorder %s107, %s108
      %p120 = scmp.eq.s32.totalorder %s30, 1
      %p121 = por %p119, %p120
      %p123 = scmp.ne.s32.totalorder %s108, %s122
      %p124 = scmp.eq.s32.totalorder %s30, 0
      %p125 = por %p123, %p124
      %s126 = ssub.s32 %s24, %s31
      %p127 = scmp.eq.s32.totalorder %s126, 0
      %s129 = sadd.s32 %s128, 1
      %s130 = scalar_select %p127, %s128, %s129
      %p133 = pneg %p127
      %p134 = scmp.eq.s32.totalorder %s24, 1
      %p135 = por %p133, %p134
      %p136 = scmp.ne.s32.totalorder %s128, %s131
      %p137 = scmp.eq.s32.totalorder %s24, 0
      %p138 = por %p136, %p137
      %p139 = scmp.ne.s32.totalorder %s128, %s131
      %p140 = scmp.eq.s32.totalorder %s29, 1
      %p141 = por %p139, %p140
      %p142 = scmp.ne.s32.totalorder %s131, %s132
      %p143 = scmp.eq.s32.totalorder %s29, 0
      %p144 = por %p142, %p143
      %p145 = scmp.ne.s32.totalorder %s131, %s132
      %p146 = scmp.eq.s32.totalorder %s30, 1
      %p147 = por %p145, %p146
      %p149 = scmp.ne.s32.totalorder %s132, %s148
      %p150 = scmp.eq.s32.totalorder %s30, 0
      %p151 = por %p149, %p150
      %s152 = ssub.s32 %s24, %s31
      %p153 = scmp.eq.s32.totalorder %s152, 0
      %s155 = sadd.s32 %s154, 1
      %s156 = scalar_select %p153, %s154, %s155
      %p159 = pneg %p153
      %p160 = scmp.eq.s32.totalorder %s24, 1
      %p161 = por %p159, %p160
      %p162 = scmp.ne.s32.totalorder %s154, %s157
      %p163 = scmp.eq.s32.totalorder %s24, 0
      %p164 = por %p162, %p163
      %p165 = scmp.ne.s32.totalorder %s154, %s157
      %p166 = scmp.eq.s32.totalorder %s29, 1
      %p167 = por %p165, %p166
      %p168 = scmp.ne.s32.totalorder %s157, %s158
      %p169 = scmp.eq.s32.totalorder %s29, 0
      %p170 = por %p168, %p169
      %p171 = scmp.ne.s32.totalorder %s157, %s158
      %p172 = scmp.eq.s32.totalorder %s30, 1
      %p173 = por %p171, %p172
      %p175 = scmp.ne.s32.totalorder %s158, %s174
      %p176 = scmp.eq.s32.totalorder %s30, 0
      %p177 = por %p175, %p176
      %p178 = scmp.le.s32.totalorder 1, %s24
      %p179 = scmp.lt.s32.totalorder %s24, 3
      %p180 = pnand %p178, %p179
      %p181 = pneg %p180
      // Predicated region
      $region9: #{_lowpass_pair_pallas.1} parent=5 // pred_check
        _
      $region10: #{_lowpass_pair_pallas.1} parent=5 // pred_check_branch
        %183 = sbr.rel (%p180) target = $region12
      $region11: #{_lowpass_pair_pallas.1} parent=5 // pred_region
        %s184 = ssub.s32 %s24, 1
        // Predicated region
        $region13: #{_lowpass_pair_pallas.1} parent=11 // pred_check
          %p185 = pneg %p97
        $region14: #{_lowpass_pair_pallas.1} parent=11 // pred_check_branch
          %187 = sbr.rel (%p185) target = $region16
        $region15: #{_lowpass_pair_pallas.1} parent=11 // pred_region
          _
        $region16: #{_lowpass_pair_pallas.1} parent=11 // pred_fallthru
          _
        // Predicated region
        $region17: #{_lowpass_pair_pallas.1} parent=11 // pred_check
          %p188 = pneg %p118
        $region18: #{_lowpass_pair_pallas.1} parent=11 // pred_check_branch
          %190 = sbr.rel (%p188) target = $region20
        $region19: #{_lowpass_pair_pallas.1} parent=11 // pred_region
          _
        $region20: #{_lowpass_pair_pallas.1} parent=11 // pred_fallthru
          _
      $region12: #{_lowpass_pair_pallas.1} parent=5 // pred_fallthru
        _
      %p191 = scmp.lt.s32.totalorder %s24, 2
      // Predicated region
      $region21: #{_lowpass_pair_pallas.1} parent=5 // pred_check
        %p192 = pneg %p191
      $region22: #{_lowpass_pair_pallas.1} parent=5 // pred_check_branch
        %194 = sbr.rel (%p192) target = $region24
      $region23: #{_lowpass_pair_pallas.1} parent=5 // pred_region
        // Predicated region
        $region25: #{_lowpass_pair_pallas.1} parent=23 // pred_check
          %p195 = pneg %p44
        $region26: #{_lowpass_pair_pallas.1} parent=23 // pred_check_branch
          %197 = sbr.rel (%p195) target = $region28
        $region27: #{_lowpass_pair_pallas.1} parent=23 // pred_region
          %s198 = sand.u32 %s34, 1
          %s199 = scalar_lea.sflag [#allocation4], %s198
          %s200 = sand.u32 %s34, 1
          %s201 = smul.addr %s200, 64
          %s202 = scalar_lea.vmem [#allocation3], %s201
          %s203 = smul.u32 4, %s24
          %s205 = ssub.s32 1024, 1024
          %206 = vsyncadd %s199, %s205
          %s207 = smul.addr %s203, 2
          %s208 = smul.addr %s207, 128
          %s209 = scalar_lea.hbm %s0, %s208
          %s210 = sshll.u32 %s202, 4
          %s211 = int_to_ptr.vmem [resolvable:$true] %s210
          %216 = dma.hbm_to_vmem [thread:$0]  %s209, 1024, %s211, %s199, 128, 128, 8
        $region28: #{_lowpass_pair_pallas.1} parent=23 // pred_fallthru
          _
        // Predicated region
        $region29: #{_lowpass_pair_pallas.1} parent=23 // pred_check
          %p217 = pneg %p70
        $region30: #{_lowpass_pair_pallas.1} parent=23 // pred_check_branch
          %219 = sbr.rel (%p217) target = $region32
        $region31: #{_lowpass_pair_pallas.1} parent=23 // pred_region
          %s220 = sand.u32 %s60, 1
          %s221 = scalar_lea.sflag [#allocation7], %s220
          %s222 = sand.u32 %s60, 1
          %s223 = smul.addr %s222, 64
          %s224 = scalar_lea.vmem [#allocation6], %s223
          %s225 = smul.u32 4, %s24
          %s227 = ssub.s32 1024, 1024
          %228 = vsyncadd %s221, %s227
          %s229 = smul.addr %s225, 2
          %s230 = smul.addr %s229, 128
          %s231 = scalar_lea.hbm %s1, %s230
          %s232 = sshll.u32 %s224, 4
          %s233 = int_to_ptr.vmem [resolvable:$true] %s232
          %238 = dma.hbm_to_vmem [thread:$0]  %s231, 1024, %s233, %s221, 128, 128, 8
        $region32: #{_lowpass_pair_pallas.1} parent=23 // pred_fallthru
          _
      $region24: #{_lowpass_pair_pallas.1} parent=5 // pred_fallthru
        _
      %p239 = scmp.le.s32.totalorder 1, %s24
      %p240 = scmp.lt.s32.totalorder %s24, 3
      %p241 = pnand %p239, %p240
      %p242 = pneg %p241
      // Predicated region
      $region33: #{_lowpass_pair_pallas.1} parent=5 // pred_check
        _
      $region34: #{_lowpass_pair_pallas.1} parent=5 // pred_check_branch
        %244 = sbr.rel (%p241) target = $region36
      $region35: #{_lowpass_pair_pallas.1} parent=5 // pred_region
        %s245 = ssub.s32 %s24, 1
        %s246 = sand.u32 %s37, 1
        %s247 = scalar_lea.sflag [#allocation4], %s246
        %s248 = sand.u32 %s37, 1
        %s249 = smul.addr %s248, 64
        %s250 = scalar_lea.vmem [#allocation3], %s249
        // Predicated region
        $region37: #{_lowpass_pair_pallas.1} parent=35 // pred_check
          %p251 = pneg %p50
        $region38: #{_lowpass_pair_pallas.1} parent=35 // pred_check_branch
          %253 = sbr.rel (%p251) target = $region40
        $region39: #{_lowpass_pair_pallas.1} parent=35 // pred_region
          %254 = dma.done %s247, 1024
        $region40: #{_lowpass_pair_pallas.1} parent=35 // pred_fallthru
          _
        %s255 = sand.u32 %s63, 1
        %s256 = scalar_lea.sflag [#allocation7], %s255
        %s257 = sand.u32 %s63, 1
        %s258 = smul.addr %s257, 64
        %s259 = scalar_lea.vmem [#allocation6], %s258
        // Predicated region
        $region41: #{_lowpass_pair_pallas.1} parent=35 // pred_check
          %p260 = pneg %p76
        $region42: #{_lowpass_pair_pallas.1} parent=35 // pred_check_branch
          %262 = sbr.rel (%p260) target = $region44
        $region43: #{_lowpass_pair_pallas.1} parent=35 // pred_region
          %263 = dma.done %s256, 1024
        $region44: #{_lowpass_pair_pallas.1} parent=35 // pred_fallthru
          _
        %s264 = sand.u32 %s37, 1
        %s265 = scalar_lea.sflag [#allocation4], %s264
        %s266 = sand.u32 %s37, 1
        %s267 = smul.addr %s266, 64
        %s268 = scalar_lea.vmem [#allocation3], %s267
        %p269 = pneg %p50
        %p270 = pneg %p47
        %s271 = sand.u32 %s63, 1
        %s272 = scalar_lea.sflag [#allocation7], %s271
        %s273 = sand.u32 %s63, 1
        %s274 = smul.addr %s273, 64
        %s275 = scalar_lea.vmem [#allocation6], %s274
        %p276 = pneg %p76
        %p277 = pneg %p73
        %p278 = pneg %p97
        %p279 = pneg %p94
        %p280 = pneg %p118
        %p281 = pneg %p115
        %p282 = pneg %p144
        %p283 = pneg %p141
        %s284 = sand.u32 %s131, 1
        %s285 = scalar_lea.sflag [#allocation5], %s284
        %s286 = sand.u32 %s131, 1
        %s287 = smul.addr %s286, 32
        %s288 = scalar_lea.vmem [#allocation8], %s287
        %p289 = pneg %p170
        %p290 = pneg %p167
        %s291 = sand.u32 %s157, 1
        %s292 = scalar_lea.sflag [#allocation10], %s291
        %s293 = sand.u32 %s157, 1
        %s294 = smul.addr %s293, 32
        %s295 = scalar_lea.vmem [#allocation9], %s294
        %s296 = smul.u32 4, %s29
        %s297 = smul.u32 4, %s29
        %s298 = smul.u32 4, %s29
        %s299 = smul.u32 4, %s29
        %v300 = vld [vmem:[%s2] sm:$0xff]
        %v301 = vld [vmem:[%s3] sm:$0xff]
        %v302 = vld [vmem:[%s3 + $0x8] sm:$0xff]
        %v303 = vld [vmem:[%s250] sm:$0xff]
        %v304 = vld [vmem:[%s250 + $0x8] sm:$0xff]
        %v305 = vld [vmem:[%s250 + $0x10] sm:$0xff]
        %v306 = vld [vmem:[%s250 + $0x18] sm:$0xff]
        %v307 = vld [vmem:[%s250 + $0x20] sm:$0xff]
        %v308 = vld [vmem:[%s250 + $0x28] sm:$0xff]
        %v309 = vld [vmem:[%s250 + $0x30] sm:$0xff]
        %v310 = vld [vmem:[%s250 + $0x38] sm:$0xff]
        %vm311 = vcmask 130048
        %v313 = vsel %vm311, %v303, 0
        %v316 = vsel %vm311, %v304, 0
        %v319 = vsel %vm311, %v305, 0
        %v322 = vsel %vm311, %v306, 0
        %v325 = vsel %vm311, %v307, 0
        %v328 = vsel %vm311, %v308, 0
        %v331 = vsel %vm311, %v309, 0
        %v334 = vsel %vm311, %v310, 0
        %336 = vmatprep.subr.mxu0 0.0
        %v337 = vand.u32 %v301, 4294901760
        %338 = vmatpush1.msra.mxu0 %v337
        %339 = vmatprep.subr.mxu0 0.0
        %v340 = vand.u32 %v302, 4294901760
        %341 = vmatpush1.msra.mxu0 %v340
        %342 = vmatprep.subr.mxu0 0.0
        %343 = vmatpush1.msra.mxu0 0.0
        %344 = vmatprep.subr.mxu0 0.0
        %345 = vmatpush1.msra.mxu0 0.0
        %346 = vmatprep.subr.mxu0 0.0
        %347 = vmatpush1.msra.mxu0 0.0
        %348 = vmatprep.subr.mxu0 0.0
        %349 = vmatpush1.msra.mxu0 0.0
        %350 = vmatprep.subr.mxu0 0.0
        %351 = vmatpush1.msra.mxu0 0.0
        %352 = vmatprep.subr.mxu0 0.0
        %353 = vmatpush1.msra.mxu0 0.0
        %354 = vmatprep.subr.mxu0 0.0
        %355 = vmatpush1.msra.mxu0 0.0
        %356 = vmatprep.subr.mxu0 0.0
        %357 = vmatpush1.msra.mxu0 0.0
        %358 = vmatprep.subr.mxu0 0.0
        %359 = vmatpush1.msra.mxu0 0.0
        %360 = vmatprep.subr.mxu0 0.0
        %361 = vmatpush1.msra.mxu0 0.0
        %362 = vmatprep.subr.mxu0 0.0
        %363 = vmatpush1.msra.mxu0 0.0
        %364 = vmatprep.subr.mxu0 0.0
        %365 = vmatpush1.msra.mxu0 0.0
        %366 = vmatprep.subr.mxu0 0.0
        %367 = vmatpush1.msra.mxu0 0.0
        %368 = vmatprep.subr.mxu0 0.0
        %369 = vmatpush1.msra.mxu0 0.0
        %370 = vmatprep.subr.mxu0 0.0
        %371 = vmatpush1.msra.mxu0 0.0
        %372 = vmatprep.subr.mxu0 0.0
        %373 = vmatpush1.msra.mxu0 0.0
        %374 = vmatprep.subr.mxu0 0.0
        %375 = vmatpush1.msra.mxu0 0.0
        %376 = vmatprep.subr.mxu0 0.0
        %377 = vmatpush1.msra.mxu0 0.0
        %378 = vmatprep.subr.mxu0 0.0
        %379 = vmatpush1.msra.mxu0 0.0
        %380 = vmatprep.subr.mxu0 0.0
        %381 = vmatpush1.msra.mxu0 0.0
        %382 = vmatprep.subr.mxu0 0.0
        %383 = vmatpush1.msra.mxu0 0.0
        %384 = vmatprep.subr.mxu0 0.0
        %385 = vmatpush1.msra.mxu0 0.0
        %386 = vmatprep.subr.mxu0 0.0
        %387 = vmatpush1.msra.mxu0 0.0
        %388 = vmatprep.subr.mxu0 0.0
        %389 = vmatpush1.msra.mxu0 0.0
        %390 = vmatprep.subr.mxu0 0.0
        %391 = vmatpush1.msra.mxu0 0.0
        %392 = vmatprep.subr.mxu0 0.0
        %393 = vmatpush1.msra.mxu0 0.0
        %394 = vmatprep.subr.mxu0 0.0
        %395 = vmatpush1.msra.mxu0 0.0
        %396 = vmatprep.subr.mxu0 0.0
        %397 = vmatpush1.msra.mxu0 0.0
        %398 = vmatprep.subr.mxu0 0.0
        %399 = vmatpush1.msra.mxu0 0.0
        %400 = vmatprep.subr.mxu0 0.0
        %401 = vmatpush1.msra.mxu0 0.0
        %402 = vmatprep.mubr.f32.mxu0 0.0
        %v403 = vand.u32 %v313, 4294901760
        %v404 = vsub.f32 %v313, %v403
        %v405 = vand.u32 %v404, 4294901760
        %v406 = vsub.f32 %v404, %v405
        %v407 = vand.u32 %v406, 4294901760
        %408 = vmatmul.mubr.f32.gmra.mrb[0].mxu0 %v407
        %v409 = vpop.f32.mrb[0].mxu0
        %v410 = vadd.f32 0.0, %v409
        %v411 = vpop.f32.mrb[0].mxu0
        %412 = vmatprep.mubr.f32.mxu0 0.0
        %v413 = vand.u32 %v316, 4294901760
        %v414 = vsub.f32 %v316, %v413
        %v415 = vand.u32 %v414, 4294901760
        %v416 = vsub.f32 %v414, %v415
        %v417 = vand.u32 %v416, 4294901760
        %418 = vmatmul.mubr.f32.gmra.mrb[0].mxu0 %v417
        %v419 = vpop.f32.mrb[0].mxu0
        %v420 = vadd.f32 0.0, %v419
        %v421 = vpop.f32.mrb[0].mxu0
        %422 = vmatprep.mubr.f32.mxu0 0.0
        %v423 = vand.u32 %v319, 4294901760
        %v424 = vsub.f32 %v319, %v423
        %v425 = vand.u32 %v424, 4294901760
        %v426 = vsub.f32 %v424, %v425
        %v427 = vand.u32 %v426, 4294901760
        %428 = vmatmul.mubr.f32.gmra.mrb[0].mxu0 %v427
        %v429 = vpop.f32.mrb[0].mxu0
        %v430 = vadd.f32 0.0, %v429
        %v431 = vpop.f32.mrb[0].mxu0
        %432 = vmatprep.mubr.f32.mxu0 0.0
        %v433 = vand.u32 %v322, 4294901760
        %v434 = vsub.f32 %v322, %v433
        %v435 = vand.u32 %v434, 4294901760
        %v436 = vsub.f32 %v434, %v435
        %v437 = vand.u32 %v436, 4294901760
        %438 = vmatmul.mubr.f32.gmra.mrb[0].mxu0 %v437
        %v439 = vpop.f32.mrb[0].mxu0
        %v440 = vadd.f32 0.0, %v439
        %v441 = vpop.f32.mrb[0].mxu0
        %442 = vmatprep.mubr.f32.mxu0 0.0
        %v443 = vand.u32 %v325, 4294901760
        %v444 = vsub.f32 %v325, %v443
        %v445 = vand.u32 %v444, 4294901760
        %v446 = vsub.f32 %v444, %v445
        %v447 = vand.u32 %v446, 4294901760
        %448 = vmatmul.mubr.f32.gmra.mrb[0].mxu0 %v447
        %v449 = vpop.f32.mrb[0].mxu0
        %v450 = vadd.f32 0.0, %v449
        %v451 = vpop.f32.mrb[0].mxu0
        %452 = vmatprep.mubr.f32.mxu0 0.0
        %v453 = vand.u32 %v328, 4294901760
        %v454 = vsub.f32 %v328, %v453
        %v455 = vand.u32 %v454, 4294901760
        %v456 = vsub.f32 %v454, %v455
        %v457 = vand.u32 %v456, 4294901760
        %458 = vmatmul.mubr.f32.gmra.mrb[0].mxu0 %v457
        %v459 = vpop.f32.mrb[0].mxu0
        %v460 = vadd.f32 0.0, %v459
        %v461 = vpop.f32.mrb[0].mxu0
        %462 = vmatprep.mubr.f32.mxu0 0.0
        %v463 = vand.u32 %v331, 4294901760
        %v464 = vsub.f32 %v331, %v463
        %v465 = vand.u32 %v464, 4294901760
        %v466 = vsub.f32 %v464, %v465
        %v467 = vand.u32 %v466, 4294901760
        %468 = vmatmul.mubr.f32.gmra.mrb[0].mxu0 %v467
        %v469 = vpop.f32.mrb[0].mxu0
        %v470 = vadd.f32 0.0, %v469
        %v471 = vpop.f32.mrb[0].mxu0
        %472 = vmatprep.mubr.f32.mxu0 0.0
        %v473 = vand.u32 %v334, 4294901760
        %v474 = vsub.f32 %v334, %v473
        %v475 = vand.u32 %v474, 4294901760
        %v476 = vsub.f32 %v474, %v475
        %v477 = vand.u32 %v476, 4294901760
        %478 = vmatmul.mubr.f32.gmra.mrb[0].mxu0 %v477
        %v479 = vpop.f32.mrb[0].mxu0
        %v480 = vadd.f32 0.0, %v479
        %v481 = vpop.f32.mrb[0].mxu0
        %482 = vdwg.mxu0
        %483 = vmatprep.subr.mxu0 0.0
        %v484 = vand.u32 %v301, 4294901760
        %v485 = vsub.f32 %v301, %v484
        %v486 = vand.u32 %v485, 4294901760
        %v487 = vsub.f32 %v485, %v486
        %v488 = vand.u32 %v487, 4294901760
        %489 = vmatpush1.msra.mxu0 %v488
        %490 = vmatprep.subr.mxu0 0.0
        %v491 = vand.u32 %v302, 4294901760
        %v492 = vsub.f32 %v302, %v491
        %v493 = vand.u32 %v492, 4294901760
        %v494 = vsub.f32 %v492, %v493
        %v495 = vand.u32 %v494, 4294901760
        %496 = vmatpush1.msra.mxu0 %v495
        %497 = vmatprep.subr.mxu0 0.0
        %498 = vmatpush1.msra.mxu0 0.0
        %499 = vmatprep.subr.mxu0 0.0
        %500 = vmatpush1.msra.mxu0 0.0
        %501 = vmatprep.subr.mxu0 0.0
        %502 = vmatpush1.msra.mxu0 0.0
        %503 = vmatprep.subr.mxu0 0.0
        %504 = vmatpush1.msra.mxu0 0.0
        %505 = vmatprep.subr.mxu0 0.0
        %506 = vmatpush1.msra.mxu0 0.0
        %507 = vmatprep.subr.mxu0 0.0
        %508 = vmatpush1.msra.mxu0 0.0
        %509 = vmatprep.subr.mxu0 0.0
        %510 = vmatpush1.msra.mxu0 0.0
        %511 = vmatprep.subr.mxu0 0.0
        %512 = vmatpush1.msra.mxu0 0.0
        %513 = vmatprep.subr.mxu0 0.0
        %514 = vmatpush1.msra.mxu0 0.0
        %515 = vmatprep.subr.mxu0 0.0
        %516 = vmatpush1.msra.mxu0 0.0
        %517 = vmatprep.subr.mxu0 0.0
        %518 = vmatpush1.msra.mxu0 0.0
        %519 = vmatprep.subr.mxu0 0.0
        %520 = vmatpush1.msra.mxu0 0.0
        %521 = vmatprep.subr.mxu0 0.0
        %522 = vmatpush1.msra.mxu0 0.0
        %523 = vmatprep.subr.mxu0 0.0
        %524 = vmatpush1.msra.mxu0 0.0
        %525 = vmatprep.subr.mxu0 0.0
        %526 = vmatpush1.msra.mxu0 0.0
        %527 = vmatprep.subr.mxu0 0.0
        %528 = vmatpush1.msra.mxu0 0.0
        %529 = vmatprep.subr.mxu0 0.0
        %530 = vmatpush1.msra.mxu0 0.0
        %531 = vmatprep.subr.mxu0 0.0
        %532 = vmatpush1.msra.mxu0 0.0
        %533 = vmatprep.subr.mxu0 0.0
        %534 = vmatpush1.msra.mxu0 0.0
        %535 = vmatprep.subr.mxu0 0.0
        %536 = vmatpush1.msra.mxu0 0.0
        %537 = vmatprep.subr.mxu0 0.0
        %538 = vmatpush1.msra.mxu0 0.0
        %539 = vmatprep.subr.mxu0 0.0
        %540 = vmatpush1.msra.mxu0 0.0
        %541 = vmatprep.subr.mxu0 0.0
        %542 = vmatpush1.msra.mxu0 0.0
        %543 = vmatprep.subr.mxu0 0.0
        %544 = vmatpush1.msra.mxu0 0.0
        %545 = vmatprep.subr.mxu0 0.0
        %546 = vmatpush1.msra.mxu0 0.0
        %547 = vmatprep.subr.mxu0 0.0
        %548 = vmatpush1.msra.mxu0 0.0
        %549 = vmatprep.subr.mxu0 0.0
        %550 = vmatpush1.msra.mxu0 0.0
        %551 = vmatprep.subr.mxu0 0.0
        %552 = vmatpush1.msra.mxu0 0.0
        %553 = vmatprep.subr.mxu0 0.0
        %554 = vmatpush1.msra.mxu0 0.0
        %555 = vmatprep.subr.mxu0 0.0
        %556 = vmatpush1.msra.mxu0 0.0
        %557 = vmatprep.mubr.f32.mxu0 0.0
        %v558 = vand.u32 %v313, 4294901760
        %559 = vmatmul.mubr.f32.gmra.mrb[0].mxu0 %v558
        %v560 = vpop.f32.mrb[0].mxu0
        %v561 = vadd.f32 %v410, %v560
        %v562 = vpop.f32.mrb[0].mxu0
        %563 = vmatprep.mubr.f32.mxu0 0.0
        %v564 = vand.u32 %v316, 4294901760
        %565 = vmatmul.mubr.f32.gmra.mrb[0].mxu0 %v564
        %v566 = vpop.f32.mrb[0].mxu0
        %v567 = vadd.f32 %v420, %v566
        %v568 = vpop.f32.mrb[0].mxu0
        %569 = vmatprep.mubr.f32.mxu0 0.0
        %v570 = vand.u32 %v319, 4294901760
        %571 = vmatmul.mubr.f32.gmra.mrb[0].mxu0 %v570
        %v572 = vpop.f32.mrb[0].mxu0
        %v573 = vadd.f32 %v430, %v572
        %v574 = vpop.f32.mrb[0].mxu0
        %575 = vmatprep.mubr.f32.mxu0 0.0
        %v576 = vand.u32 %v322, 4294901760
        %577 = vmatmul.mubr.f32.gmra.mrb[0].mxu0 %v576
        %v578 = vpop.f32.mrb[0].mxu0
        %v579 = vadd.f32 %v440, %v578
        %v580 = vpop.f32.mrb[0].mxu0
        %581 = vmatprep.mubr.f32.mxu0 0.0
        %v582 = vand.u32 %v325, 4294901760
        %583 = vmatmul.mubr.f32.gmra.mrb[0].mxu0 %v582
        %v584 = vpop.f32.mrb[0].mxu0
        %v585 = vadd.f32 %v450, %v584
        %v586 = vpop.f32.mrb[0].mxu0
        %587 = vmatprep.mubr.f32.mxu0 0.0
        %v588 = vand.u32 %v328, 4294901760
        %589 = vmatmul.mubr.f32.gmra.mrb[0].mxu0 %v588
        %v590 = vpop.f32.mrb[0].mxu0
        %v591 = vadd.f32 %v460, %v590
        %v592 = vpop.f32.mrb[0].mxu0
        %593 = vmatprep.mubr.f32.mxu0 0.0
        %v594 = vand.u32 %v331, 4294901760
        %595 = vmatmul.mubr.f32.gmra.mrb[0].mxu0 %v594
        %v596 = vpop.f32.mrb[0].mxu0
        %v597 = vadd.f32 %v470, %v596
        %v598 = vpop.f32.mrb[0].mxu0
        %599 = vmatprep.mubr.f32.mxu0 0.0
        %v600 = vand.u32 %v334, 4294901760
        %601 = vmatmul.mubr.f32.gmra.mrb[0].mxu0 %v600
        %v602 = vpop.f32.mrb[0].mxu0
        %v603 = vadd.f32 %v480, %v602
        %v604 = vpop.f32.mrb[0].mxu0
        %605 = vdwg.mxu0
        %606 = vmatprep.subr.mxu0 0.0
        %v607 = vand.u32 %v301, 4294901760
        %v608 = vsub.f32 %v301, %v607
        %609 = vmatpush1.msra.mxu0 %v608
        %610 = vmatprep.subr.mxu0 0.0
        %v611 = vand.u32 %v302, 4294901760
        %v612 = vsub.f32 %v302, %v611
        %613 = vmatpush1.msra.mxu0 %v612
        %614 = vmatprep.subr.mxu0 0.0
        %615 = vmatpush1.msra.mxu0 0.0
        %616 = vmatprep.subr.mxu0 0.0
        %617 = vmatpush1.msra.mxu0 0.0
        %618 = vmatprep.subr.mxu0 0.0
        %619 = vmatpush1.msra.mxu0 0.0
        %620 = vmatprep.subr.mxu0 0.0
        %621 = vmatpush1.msra.mxu0 0.0
        %622 = vmatprep.subr.mxu0 0.0
        %623 = vmatpush1.msra.mxu0 0.0
        %624 = vmatprep.subr.mxu0 0.0
        %625 = vmatpush1.msra.mxu0 0.0
        %626 = vmatprep.subr.mxu0 0.0
        %627 = vmatpush1.msra.mxu0 0.0
        %628 = vmatprep.subr.mxu0 0.0
        %629 = vmatpush1.msra.mxu0 0.0
        %630 = vmatprep.subr.mxu0 0.0
        %631 = vmatpush1.msra.mxu0 0.0
        %632 = vmatprep.subr.mxu0 0.0
        %633 = vmatpush1.msra.mxu0 0.0
        %634 = vmatprep.subr.mxu0 0.0
        %635 = vmatpush1.msra.mxu0 0.0
        %636 = vmatprep.subr.mxu0 0.0
        %637 = vmatpush1.msra.mxu0 0.0
        %638 = vmatprep.subr.mxu0 0.0
        %639 = vmatpush1.msra.mxu0 0.0
        %640 = vmatprep.subr.mxu0 0.0
        %641 = vmatpush1.msra.mxu0 0.0
        %642 = vmatprep.subr.mxu0 0.0
        %643 = vmatpush1.msra.mxu0 0.0
        %644 = vmatprep.subr.mxu0 0.0
        %645 = vmatpush1.msra.mxu0 0.0
        %646 = vmatprep.subr.mxu0 0.0
        %647 = vmatpush1.msra.mxu0 0.0
        %648 = vmatprep.subr.mxu0 0.0
        %649 = vmatpush1.msra.mxu0 0.0
        %650 = vmatprep.subr.mxu0 0.0
        %651 = vmatpush1.msra.mxu0 0.0
        %652 = vmatprep.subr.mxu0 0.0
        %653 = vmatpush1.msra.mxu0 0.0
        %654 = vmatprep.subr.mxu0 0.0
        %655 = vmatpush1.msra.mxu0 0.0
        %656 = vmatprep.subr.mxu0 0.0
        %657 = vmatpush1.msra.mxu0 0.0
        %658 = vmatprep.subr.mxu0 0.0
        %659 = vmatpush1.msra.mxu0 0.0
        %660 = vmatprep.subr.mxu0 0.0
        %661 = vmatpush1.msra.mxu0 0.0
        %662 = vmatprep.subr.mxu0 0.0
        %663 = vmatpush1.msra.mxu0 0.0
        %664 = vmatprep.subr.mxu0 0.0
        %665 = vmatpush1.msra.mxu0 0.0
        %666 = vmatprep.subr.mxu0 0.0
        %667 = vmatpush1.msra.mxu0 0.0
        %668 = vmatprep.subr.mxu0 0.0
        %669 = vmatpush1.msra.mxu0 0.0
        %670 = vmatprep.subr.mxu0 0.0
        %671 = vmatpush1.msra.mxu0 0.0
        %672 = vmatprep.subr.mxu0 0.0
        %673 = vmatpush1.msra.mxu0 0.0
        %674 = vmatprep.mubr.f32.mxu0 0.0
        %v675 = vand.u32 %v313, 4294901760
        %v676 = vsub.f32 %v313, %v675
        %677 = vmatmul.mubr.f32.gmra.mrb[0].mxu0 %v676
        %v678 = vpop.f32.mrb[0].mxu0
        %v679 = vadd.f32 %v561, %v678
        %v680 = vpop.f32.mrb[0].mxu0
        %681 = vmatprep.mubr.f32.mxu0 0.0
        %v682 = vand.u32 %v316, 4294901760
        %v683 = vsub.f32 %v316, %v682
        %684 = vmatmul.mubr.f32.gmra.mrb[0].mxu0 %v683
        %v685 = vpop.f32.mrb[0].mxu0
        %v686 = vadd.f32 %v567, %v685
        %v687 = vpop.f32.mrb[0].mxu0
        %688 = vmatprep.mubr.f32.mxu0 0.0
        %v689 = vand.u32 %v319, 4294901760
        %v690 = vsub.f32 %v319, %v689
        %691 = vmatmul.mubr.f32.gmra.mrb[0].mxu0 %v690
        %v692 = vpop.f32.mrb[0].mxu0
        %v693 = vadd.f32 %v573, %v692
        %v694 = vpop.f32.mrb[0].mxu0
        %695 = vmatprep.mubr.f32.mxu0 0.0
        %v696 = vand.u32 %v322, 4294901760
        %v697 = vsub.f32 %v322, %v696
        %698 = vmatmul.mubr.f32.gmra.mrb[0].mxu0 %v697
        %v699 = vpop.f32.mrb[0].mxu0
        %v700 = vadd.f32 %v579, %v699
        %v701 = vpop.f32.mrb[0].mxu0
        %702 = vmatprep.mubr.f32.mxu0 0.0
        %v703 = vand.u32 %v325, 4294901760
        %v704 = vsub.f32 %v325, %v703
        %705 = vmatmul.mubr.f32.gmra.mrb[0].mxu0 %v704
        %v706 = vpop.f32.mrb[0].mxu0
        %v707 = vadd.f32 %v585, %v706
        %v708 = vpop.f32.mrb[0].mxu0
        %709 = vmatprep.mubr.f32.mxu0 0.0
        %v710 = vand.u32 %v328, 4294901760
        %v711 = vsub.f32 %v328, %v710
        %712 = vmatmul.mubr.f32.gmra.mrb[0].mxu0 %v711
        %v713 = vpop.f32.mrb[0].mxu0
        %v714 = vadd.f32 %v591, %v713
        %v715 = vpop.f32.mrb[0].mxu0
        %716 = vmatprep.mubr.f32.mxu0 0.0
        %v717 = vand.u32 %v331, 4294901760
        %v718 = vsub.f32 %v331, %v717
        %719 = vmatmul.mubr.f32.gmra.mrb[0].mxu0 %v718
        %v720 = vpop.f32.mrb[0].mxu0
        %v721 = vadd.f32 %v597, %v720
        %v722 = vpop.f32.mrb[0].mxu0
        %723 = vmatprep.mubr.f32.mxu0 0.0
        %v724 = vand.u32 %v334, 4294901760
        %v725 = vsub.f32 %v334, %v724
        %726 = vmatmul.mubr.f32.gmra.mrb[0].mxu0 %v725
        %v727 = vpop.f32.mrb[0].mxu0
        %v728 = vadd.f32 %v603, %v727
        %v729 = vpop.f32.mrb[0].mxu0
        %730 = vdwg.mxu0
        %731 = vmatprep.subr.mxu0 0.0
        %v732 = vand.u32 %v301, 4294901760
        %733 = vmatpush1.msra.mxu0 %v732
        %734 = vmatprep.subr.mxu0 0.0
        %v735 = vand.u32 %v302, 4294901760
        %736 = vmatpush1.msra.mxu0 %v735
        %737 = vmatprep.subr.mxu0 0.0
        %738 = vmatpush1.msra.mxu0 0.0
        %739 = vmatprep.subr.mxu0 0.0
        %740 = vmatpush1.msra.mxu0 0.0
        %741 = vmatprep.subr.mxu0 0.0
        %742 = vmatpush1.msra.mxu0 0.0
        %743 = vmatprep.subr.mxu0 0.0
        %744 = vmatpush1.msra.mxu0 0.0
        %745 = vmatprep.subr.mxu0 0.0
        %746 = vmatpush1.msra.mxu0 0.0
        %747 = vmatprep.subr.mxu0 0.0
        %748 = vmatpush1.msra.mxu0 0.0
        %749 = vmatprep.subr.mxu0 0.0
        %750 = vmatpush1.msra.mxu0 0.0
        %751 = vmatprep.subr.mxu0 0.0
        %752 = vmatpush1.msra.mxu0 0.0
        %753 = vmatprep.subr.mxu0 0.0
        %754 = vmatpush1.msra.mxu0 0.0
        %755 = vmatprep.subr.mxu0 0.0
        %756 = vmatpush1.msra.mxu0 0.0
        %757 = vmatprep.subr.mxu0 0.0
        %758 = vmatpush1.msra.mxu0 0.0
        %759 = vmatprep.subr.mxu0 0.0
        %760 = vmatpush1.msra.mxu0 0.0
        %761 = vmatprep.subr.mxu0 0.0
        %762 = vmatpush1.msra.mxu0 0.0
        %763 = vmatprep.subr.mxu0 0.0
        %764 = vmatpush1.msra.mxu0 0.0
        %765 = vmatprep.subr.mxu0 0.0
        %766 = vmatpush1.msra.mxu0 0.0
        %767 = vmatprep.subr.mxu0 0.0
        %768 = vmatpush1.msra.mxu0 0.0
        %769 = vmatprep.subr.mxu0 0.0
        %770 = vmatpush1.msra.mxu0 0.0
        %771 = vmatprep.subr.mxu0 0.0
        %772 = vmatpush1.msra.mxu0 0.0
        %773 = vmatprep.subr.mxu0 0.0
        %774 = vmatpush1.msra.mxu0 0.0
        %775 = vmatprep.subr.mxu0 0.0
        %776 = vmatpush1.msra.mxu0 0.0
        %777 = vmatprep.subr.mxu0 0.0
        %778 = vmatpush1.msra.mxu0 0.0
        %779 = vmatprep.subr.mxu0 0.0
        %780 = vmatpush1.msra.mxu0 0.0
        %781 = vmatprep.subr.mxu0 0.0
        %782 = vmatpush1.msra.mxu0 0.0
        %783 = vmatprep.subr.mxu0 0.0
        %784 = vmatpush1.msra.mxu0 0.0
        %785 = vmatprep.subr.mxu0 0.0
        %786 = vmatpush1.msra.mxu0 0.0
        %787 = vmatprep.subr.mxu0 0.0
        %788 = vmatpush1.msra.mxu0 0.0
        %789 = vmatprep.subr.mxu0 0.0
        %790 = vmatpush1.msra.mxu0 0.0
        %791 = vmatprep.subr.mxu0 0.0
        %792 = vmatpush1.msra.mxu0 0.0
        %793 = vmatprep.subr.mxu0 0.0
        %794 = vmatpush1.msra.mxu0 0.0
        %795 = vmatprep.subr.mxu0 0.0
        %796 = vmatpush1.msra.mxu0 0.0
        %797 = vmatprep.mubr.f32.mxu0 0.0
        %v798 = vand.u32 %v313, 4294901760
        %v799 = vsub.f32 %v313, %v798
        %v800 = vand.u32 %v799, 4294901760
        %801 = vmatmul.mubr.f32.gmra.mrb[0].mxu0 %v800
        %v802 = vpop.f32.mrb[0].mxu0
        %v803 = vadd.f32 %v679, %v802
        %v804 = vpop.f32.mrb[0].mxu0
        %805 = vmatprep.mubr.f32.mxu0 0.0
        %v806 = vand.u32 %v316, 4294901760
        %v807 = vsub.f32 %v316, %v806
        %v808 = vand.u32 %v807, 4294901760
        %809 = vmatmul.mubr.f32.gmra.mrb[0].mxu0 %v808
        %v810 = vpop.f32.mrb[0].mxu0
        %v811 = vadd.f32 %v686, %v810
        %v812 = vpop.f32.mrb[0].mxu0
        %813 = vmatprep.mubr.f32.mxu0 0.0
        %v814 = vand.u32 %v319, 4294901760
        %v815 = vsub.f32 %v319, %v814
        %v816 = vand.u32 %v815, 4294901760
        %817 = vmatmul.mubr.f32.gmra.mrb[0].mxu0 %v816
        %v818 = vpop.f32.mrb[0].mxu0
        %v819 = vadd.f32 %v693, %v818
        %v820 = vpop.f32.mrb[0].mxu0
        %821 = vmatprep.mubr.f32.mxu0 0.0
        %v822 = vand.u32 %v322, 4294901760
        %v823 = vsub.f32 %v322, %v822
        %v824 = vand.u32 %v823, 4294901760
        %825 = vmatmul.mubr.f32.gmra.mrb[0].mxu0 %v824
        %v826 = vpop.f32.mrb[0].mxu0
        %v827 = vadd.f32 %v700, %v826
        %v828 = vpop.f32.mrb[0].mxu0
        %829 = vmatprep.mubr.f32.mxu0 0.0
        %v830 = vand.u32 %v325, 4294901760
        %v831 = vsub.f32 %v325, %v830
        %v832 = vand.u32 %v831, 4294901760
        %833 = vmatmul.mubr.f32.gmra.mrb[0].mxu0 %v832
        %v834 = vpop.f32.mrb[0].mxu0
        %v835 = vadd.f32 %v707, %v834
        %v836 = vpop.f32.mrb[0].mxu0
        %837 = vmatprep.mubr.f32.mxu0 0.0
        %v838 = vand.u32 %v328, 4294901760
        %v839 = vsub.f32 %v328, %v838
        %v840 = vand.u32 %v839, 4294901760
        %841 = vmatmul.mubr.f32.gmra.mrb[0].mxu0 %v840
        %v842 = vpop.f32.mrb[0].mxu0
        %v843 = vadd.f32 %v714, %v842
        %v844 = vpop.f32.mrb[0].mxu0
        %845 = vmatprep.mubr.f32.mxu0 0.0
        %v846 = vand.u32 %v331, 4294901760
        %v847 = vsub.f32 %v331, %v846
        %v848 = vand.u32 %v847, 4294901760
        %849 = vmatmul.mubr.f32.gmra.mrb[0].mxu0 %v848
        %v850 = vpop.f32.mrb[0].mxu0
        %v851 = vadd.f32 %v721, %v850
        %v852 = vpop.f32.mrb[0].mxu0
        %853 = vmatprep.mubr.f32.mxu0 0.0
        %v854 = vand.u32 %v334, 4294901760
        %v855 = vsub.f32 %v334, %v854
        %v856 = vand.u32 %v855, 4294901760
        %857 = vmatmul.mubr.f32.gmra.mrb[0].mxu0 %v856
        %v858 = vpop.f32.mrb[0].mxu0
        %v859 = vadd.f32 %v728, %v858
        %v860 = vpop.f32.mrb[0].mxu0
        %861 = vdwg.mxu0
        %862 = vmatprep.subr.mxu0 0.0
        %v863 = vand.u32 %v301, 4294901760
        %v864 = vsub.f32 %v301, %v863
        %v865 = vand.u32 %v864, 4294901760
        %866 = vmatpush1.msra.mxu0 %v865
        %867 = vmatprep.subr.mxu0 0.0
        %v868 = vand.u32 %v302, 4294901760
        %v869 = vsub.f32 %v302, %v868
        %v870 = vand.u32 %v869, 4294901760
        %871 = vmatpush1.msra.mxu0 %v870
        %872 = vmatprep.subr.mxu0 0.0
        %873 = vmatpush1.msra.mxu0 0.0
        %874 = vmatprep.subr.mxu0 0.0
        %875 = vmatpush1.msra.mxu0 0.0
        %876 = vmatprep.subr.mxu0 0.0
        %877 = vmatpush1.msra.mxu0 0.0
        %878 = vmatprep.subr.mxu0 0.0
        %879 = vmatpush1.msra.mxu0 0.0
        %880 = vmatprep.subr.mxu0 0.0
        %881 = vmatpush1.msra.mxu0 0.0
        %882 = vmatprep.subr.mxu0 0.0
        %883 = vmatpush1.msra.mxu0 0.0
        %884 = vmatprep.subr.mxu0 0.0
        %885 = vmatpush1.msra.mxu0 0.0
        %886 = vmatprep.subr.mxu0 0.0
        %887 = vmatpush1.msra.mxu0 0.0
        %888 = vmatprep.subr.mxu0 0.0
        %889 = vmatpush1.msra.mxu0 0.0
        %890 = vmatprep.subr.mxu0 0.0
        %891 = vmatpush1.msra.mxu0 0.0
        %892 = vmatprep.subr.mxu0 0.0
        %893 = vmatpush1.msra.mxu0 0.0
        %894 = vmatprep.subr.mxu0 0.0
        %895 = vmatpush1.msra.mxu0 0.0
        %896 = vmatprep.subr.mxu0 0.0
        %897 = vmatpush1.msra.mxu0 0.0
        %898 = vmatprep.subr.mxu0 0.0
        %899 = vmatpush1.msra.mxu0 0.0
        %900 = vmatprep.subr.mxu0 0.0
        %901 = vmatpush1.msra.mxu0 0.0
        %902 = vmatprep.subr.mxu0 0.0
        %903 = vmatpush1.msra.mxu0 0.0
        %904 = vmatprep.subr.mxu0 0.0
        %905 = vmatpush1.msra.mxu0 0.0
        %906 = vmatprep.subr.mxu0 0.0
        %907 = vmatpush1.msra.mxu0 0.0
        %908 = vmatprep.subr.mxu0 0.0
        %909 = vmatpush1.msra.mxu0 0.0
        %910 = vmatprep.subr.mxu0 0.0
        %911 = vmatpush1.msra.mxu0 0.0
        %912 = vmatprep.subr.mxu0 0.0
        %913 = vmatpush1.msra.mxu0 0.0
        %914 = vmatprep.subr.mxu0 0.0
        %915 = vmatpush1.msra.mxu0 0.0
        %916 = vmatprep.subr.mxu0 0.0
        %917 = vmatpush1.msra.mxu0 0.0
        %918 = vmatprep.subr.mxu0 0.0
        %919 = vmatpush1.msra.mxu0 0.0
        %920 = vmatprep.subr.mxu0 0.0
        %921 = vmatpush1.msra.mxu0 0.0
        %922 = vmatprep.subr.mxu0 0.0
        %923 = vmatpush1.msra.mxu0 0.0
        %924 = vmatprep.subr.mxu0 0.0
        %925 = vmatpush1.msra.mxu0 0.0
        %926 = vmatprep.subr.mxu0 0.0
        %927 = vmatpush1.msra.mxu0 0.0
        %928 = vmatprep.subr.mxu0 0.0
        %929 = vmatpush1.msra.mxu0 0.0
        %930 = vmatprep.subr.mxu0 0.0
        %931 = vmatpush1.msra.mxu0 0.0
        %932 = vmatprep.mubr.f32.mxu0 0.0
        %v933 = vand.u32 %v313, 4294901760
        %934 = vmatmul.mubr.f32.gmra.mrb[0].mxu0 %v933
        %v935 = vpop.f32.mrb[0].mxu0
        %v936 = vadd.f32 %v803, %v935
        %v937 = vpop.f32.mrb[0].mxu0
        %938 = vmatprep.mubr.f32.mxu0 0.0
        %v939 = vand.u32 %v316, 4294901760
        %940 = vmatmul.mubr.f32.gmra.mrb[0].mxu0 %v939
        %v941 = vpop.f32.mrb[0].mxu0
        %v942 = vadd.f32 %v811, %v941
        %v943 = vpop.f32.mrb[0].mxu0
        %944 = vmatprep.mubr.f32.mxu0 0.0
        %v945 = vand.u32 %v319, 4294901760
        %946 = vmatmul.mubr.f32.gmra.mrb[0].mxu0 %v945
        %v947 = vpop.f32.mrb[0].mxu0
        %v948 = vadd.f32 %v819, %v947
        %v949 = vpop.f32.mrb[0].mxu0
        %950 = vmatprep.mubr.f32.mxu0 0.0
        %v951 = vand.u32 %v322, 4294901760
        %952 = vmatmul.mubr.f32.gmra.mrb[0].mxu0 %v951
        %v953 = vpop.f32.mrb[0].mxu0
        %v954 = vadd.f32 %v827, %v953
        %v955 = vpop.f32.mrb[0].mxu0
        %956 = vmatprep.mubr.f32.mxu0 0.0
        %v957 = vand.u32 %v325, 4294901760
        %958 = vmatmul.mubr.f32.gmra.mrb[0].mxu0 %v957
        %v959 = vpop.f32.mrb[0].mxu0
        %v960 = vadd.f32 %v835, %v959
        %v961 = vpop.f32.mrb[0].mxu0
        %962 = vmatprep.mubr.f32.mxu0 0.0
        %v963 = vand.u32 %v328, 4294901760
        %964 = vmatmul.mubr.f32.gmra.mrb[0].mxu0 %v963
        %v965 = vpop.f32.mrb[0].mxu0
        %v966 = vadd.f32 %v843, %v965
        %v967 = vpop.f32.mrb[0].mxu0
        %968 = vmatprep.mubr.f32.mxu0 0.0
        %v969 = vand.u32 %v331, 4294901760
        %970 = vmatmul.mubr.f32.gmra.mrb[0].mxu0 %v969
        %v971 = vpop.f32.mrb[0].mxu0
        %v972 = vadd.f32 %v851, %v971
        %v973 = vpop.f32.mrb[0].mxu0
        %974 = vmatprep.mubr.f32.mxu0 0.0
        %v975 = vand.u32 %v334, 4294901760
        %976 = vmatmul.mubr.f32.gmra.mrb[0].mxu0 %v975
        %v977 = vpop.f32.mrb[0].mxu0
        %v978 = vadd.f32 %v859, %v977
        %v979 = vpop.f32.mrb[0].mxu0
        %980 = vdwg.mxu0
        %981 = vmatprep.subr.mxu0 0.0
        %v982 = vand.u32 %v301, 4294901760
        %983 = vmatpush1.msra.mxu0 %v982
        %984 = vmatprep.subr.mxu0 0.0
        %v985 = vand.u32 %v302, 4294901760
        %986 = vmatpush1.msra.mxu0 %v985
        %987 = vmatprep.subr.mxu0 0.0
        %988 = vmatpush1.msra.mxu0 0.0
        %989 = vmatprep.subr.mxu0 0.0
        %990 = vmatpush1.msra.mxu0 0.0
        %991 = vmatprep.subr.mxu0 0.0
        %992 = vmatpush1.msra.mxu0 0.0
        %993 = vmatprep.subr.mxu0 0.0
        %994 = vmatpush1.msra.mxu0 0.0
        %995 = vmatprep.subr.mxu0 0.0
        %996 = vmatpush1.msra.mxu0 0.0
        %997 = vmatprep.subr.mxu0 0.0
        %998 = vmatpush1.msra.mxu0 0.0
        %999 = vmatprep.subr.mxu0 0.0
        %1000 = vmatpush1.msra.mxu0 0.0
        %1001 = vmatprep.subr.mxu0 0.0
        %1002 = vmatpush1.msra.mxu0 0.0
        %1003 = vmatprep.subr.mxu0 0.0
        %1004 = vmatpush1.msra.mxu0 0.0
        %1005 = vmatprep.subr.mxu0 0.0
        %1006 = vmatpush1.msra.mxu0 0.0
        %1007 = vmatprep.subr.mxu0 0.0
        %1008 = vmatpush1.msra.mxu0 0.0
        %1009 = vmatprep.subr.mxu0 0.0
        %1010 = vmatpush1.msra.mxu0 0.0
        %1011 = vmatprep.subr.mxu0 0.0
        %1012 = vmatpush1.msra.mxu0 0.0
        %1013 = vmatprep.subr.mxu0 0.0
        %1014 = vmatpush1.msra.mxu0 0.0
        %1015 = vmatprep.subr.mxu0 0.0
        %1016 = vmatpush1.msra.mxu0 0.0
        %1017 = vmatprep.subr.mxu0 0.0
        %1018 = vmatpush1.msra.mxu0 0.0
        %1019 = vmatprep.subr.mxu0 0.0
        %1020 = vmatpush1.msra.mxu0 0.0
        %1021 = vmatprep.subr.mxu0 0.0
        %1022 = vmatpush1.msra.mxu0 0.0
        %1023 = vmatprep.subr.mxu0 0.0
        %1024 = vmatpush1.msra.mxu0 0.0
        %1025 = vmatprep.subr.mxu0 0.0
        %1026 = vmatpush1.msra.mxu0 0.0
        %1027 = vmatprep.subr.mxu0 0.0
        %1028 = vmatpush1.msra.mxu0 0.0
        %1029 = vmatprep.subr.mxu0 0.0
        %1030 = vmatpush1.msra.mxu0 0.0
        %1031 = vmatprep.subr.mxu0 0.0
        %1032 = vmatpush1.msra.mxu0 0.0
        %1033 = vmatprep.subr.mxu0 0.0
        %1034 = vmatpush1.msra.mxu0 0.0
        %1035 = vmatprep.subr.mxu0 0.0
        %1036 = vmatpush1.msra.mxu0 0.0
        %1037 = vmatprep.subr.mxu0 0.0
        %1038 = vmatpush1.msra.mxu0 0.0
        %1039 = vmatprep.subr.mxu0 0.0
        %1040 = vmatpush1.msra.mxu0 0.0
        %1041 = vmatprep.subr.mxu0 0.0
        %1042 = vmatpush1.msra.mxu0 0.0
        %1043 = vmatprep.subr.mxu0 0.0
        %1044 = vmatpush1.msra.mxu0 0.0
        %1045 = vmatprep.subr.mxu0 0.0
        %1046 = vmatpush1.msra.mxu0 0.0
        %1047 = vmatprep.mubr.f32.mxu0 0.0
        %v1048 = vand.u32 %v313, 4294901760
        %1049 = vmatmul.mubr.f32.gmra.mrb[0].mxu0 %v1048
        %v1050 = vpop.f32.mrb[0].mxu0
        %v1051 = vadd.f32 %v936, %v1050
        %v1052 = vpop.f32.mrb[0].mxu0
        %1053 = vmatprep.mubr.f32.mxu0 0.0
        %v1054 = vand.u32 %v316, 4294901760
        %1055 = vmatmul.mubr.f32.gmra.mrb[0].mxu0 %v1054
        %v1056 = vpop.f32.mrb[0].mxu0
        %v1057 = vadd.f32 %v942, %v1056
        %v1058 = vpop.f32.mrb[0].mxu0
        %1059 = vmatprep.mubr.f32.mxu0 0.0
        %v1060 = vand.u32 %v319, 4294901760
        %1061 = vmatmul.mubr.f32.gmra.mrb[0].mxu0 %v1060
        %v1062 = vpop.f32.mrb[0].mxu0
        %v1063 = vadd.f32 %v948, %v1062
        %v1064 = vpop.f32.mrb[0].mxu0
        %1065 = vmatprep.mubr.f32.mxu0 0.0
        %v1066 = vand.u32 %v322, 4294901760
        %1067 = vmatmul.mubr.f32.gmra.mrb[0].mxu0 %v1066
        %v1068 = vpop.f32.mrb[0].mxu0
        %v1069 = vadd.f32 %v954, %v1068
        %v1070 = vpop.f32.mrb[0].mxu0
        %1071 = vmatprep.mubr.f32.mxu0 0.0
        %v1072 = vand.u32 %v325, 4294901760
        %1073 = vmatmul.mubr.f32.gmra.mrb[0].mxu0 %v1072
        %v1074 = vpop.f32.mrb[0].mxu0
        %v1075 = vadd.f32 %v960, %v1074
        %v1076 = vpop.f32.mrb[0].mxu0
        %1077 = vmatprep.mubr.f32.mxu0 0.0
        %v1078 = vand.u32 %v328, 4294901760
        %1079 = vmatmul.mubr.f32.gmra.mrb[0].mxu0 %v1078
        %v1080 = vpop.f32.mrb[0].mxu0
        %v1081 = vadd.f32 %v966, %v1080
        %v1082 = vpop.f32.mrb[0].mxu0
        %1083 = vmatprep.mubr.f32.mxu0 0.0
        %v1084 = vand.u32 %v331, 4294901760
        %1085 = vmatmul.mubr.f32.gmra.mrb[0].mxu0 %v1084
        %v1086 = vpop.f32.mrb[0].mxu0
        %v1087 = vadd.f32 %v972, %v1086
        %v1088 = vpop.f32.mrb[0].mxu0
        %1089 = vmatprep.mubr.f32.mxu0 0.0
        %v1090 = vand.u32 %v334, 4294901760
        %1091 = vmatmul.mubr.f32.gmra.mrb[0].mxu0 %v1090
        %v1092 = vpop.f32.mrb[0].mxu0
        %v1093 = vadd.f32 %v978, %v1092
        %v1094 = vpop.f32.mrb[0].mxu0
        %1095 = vdwg.mxu0
        %vm1096 = vcmask 64512
        %1097 = vst.msk [vmem:[#allocation2] sm:$0xff] %vm1096, %v1051
        %1098 = vst.msk [vmem:[#allocation2 + $0x8] sm:$0xff] %vm1096, %v1057
        %1099 = vst.msk [vmem:[#allocation2 + $0x10] sm:$0xff] %vm1096, %v1063
        %1100 = vst.msk [vmem:[#allocation2 + $0x18] sm:$0xff] %vm1096, %v1069
        %1101 = vst.msk [vmem:[#allocation2 + $0x20] sm:$0xff] %vm1096, %v1075
        %1102 = vst.msk [vmem:[#allocation2 + $0x28] sm:$0xff] %vm1096, %v1081
        %1103 = vst.msk [vmem:[#allocation2 + $0x30] sm:$0xff] %vm1096, %v1087
        %1104 = vst.msk [vmem:[#allocation2 + $0x38] sm:$0xff] %vm1096, %v1093
        loop: start=0, step=1, limit=4
        $region45: #{_lowpass_pair_pallas.1} parent=35 // loop_pre_header
          _
        $region46: #{_lowpass_pair_pallas.1} parent=35 // loop_header
          %s1106 = sphi 0, %s1110
          %p1107 = scmp.ge.s32.totalorder %s1106, 4
        $region47: #{_lowpass_pair_pallas.1} parent=35 // loop_header_branch
          %1109 = sbr.rel (%p1107) target = $region51
        $region48: #{_lowpass_pair_pallas.1} parent=35 // loop_body
          %s1111 = smul.u32 %s1106, 16
          %s1112 = scalar_lea.vmem [#allocation2], %s1111
          %v1113 = vld [vmem:[%s1112] sm:$0xff]
          %v1114 = vld [vmem:[%s1112 + $0x8] sm:$0xff]
          %v1116 = vsel %vm311, %v300, 0
          %1118 = vmatprep.subr.mxu0 0.0
          %v1119 = vand.u32 %v1113, 4294901760
          %1120 = vmatpush1.msra.mxu0 %v1119
          %1121 = vmatprep.subr.mxu0 0.0
          %v1122 = vand.u32 %v1114, 4294901760
          %1123 = vmatpush1.msra.mxu0 %v1122
          %1124 = vmatprep.subr.mxu0 0.0
          %1125 = vmatpush1.msra.mxu0 0.0
          %1126 = vmatprep.subr.mxu0 0.0
          %1127 = vmatpush1.msra.mxu0 0.0
          %1128 = vmatprep.subr.mxu0 0.0
          %1129 = vmatpush1.msra.mxu0 0.0
          %1130 = vmatprep.subr.mxu0 0.0
          %1131 = vmatpush1.msra.mxu0 0.0
          %1132 = vmatprep.subr.mxu0 0.0
          %1133 = vmatpush1.msra.mxu0 0.0
          %1134 = vmatprep.subr.mxu0 0.0
          %1135 = vmatpush1.msra.mxu0 0.0
          %1136 = vmatprep.subr.mxu0 0.0
          %1137 = vmatpush1.msra.mxu0 0.0
          %1138 = vmatprep.subr.mxu0 0.0
          %1139 = vmatpush1.msra.mxu0 0.0
          %1140 = vmatprep.subr.mxu0 0.0
          %1141 = vmatpush1.msra.mxu0 0.0
          %1142 = vmatprep.subr.mxu0 0.0
          %1143 = vmatpush1.msra.mxu0 0.0
          %1144 = vmatprep.subr.mxu0 0.0
          %1145 = vmatpush1.msra.mxu0 0.0
          %1146 = vmatprep.subr.mxu0 0.0
          %1147 = vmatpush1.msra.mxu0 0.0
          %1148 = vmatprep.subr.mxu0 0.0
          %1149 = vmatpush1.msra.mxu0 0.0
          %1150 = vmatprep.subr.mxu0 0.0
          %1151 = vmatpush1.msra.mxu0 0.0
          %1152 = vmatprep.subr.mxu0 0.0
          %1153 = vmatpush1.msra.mxu0 0.0
          %1154 = vmatprep.subr.mxu0 0.0
          %1155 = vmatpush1.msra.mxu0 0.0
          %1156 = vmatprep.subr.mxu0 0.0
          %1157 = vmatpush1.msra.mxu0 0.0
          %1158 = vmatprep.subr.mxu0 0.0
          %1159 = vmatpush1.msra.mxu0 0.0
          %1160 = vmatprep.subr.mxu0 0.0
          %1161 = vmatpush1.msra.mxu0 0.0
          %1162 = vmatprep.subr.mxu0 0.0
          %1163 = vmatpush1.msra.mxu0 0.0
          %1164 = vmatprep.subr.mxu0 0.0
          %1165 = vmatpush1.msra.mxu0 0.0
          %1166 = vmatprep.subr.mxu0 0.0
          %1167 = vmatpush1.msra.mxu0 0.0
          %1168 = vmatprep.subr.mxu0 0.0
          %1169 = vmatpush1.msra.mxu0 0.0
          %1170 = vmatprep.subr.mxu0 0.0
          %1171 = vmatpush1.msra.mxu0 0.0
          %1172 = vmatprep.subr.mxu0 0.0
          %1173 = vmatpush1.msra.mxu0 0.0
          %1174 = vmatprep.subr.mxu0 0.0
          %1175 = vmatpush1.msra.mxu0 0.0
          %1176 = vmatprep.subr.mxu0 0.0
          %1177 = vmatpush1.msra.mxu0 0.0
          %1178 = vmatprep.subr.mxu0 0.0
          %1179 = vmatpush1.msra.mxu0 0.0
          %1180 = vmatprep.subr.mxu0 0.0
          %1181 = vmatpush1.msra.mxu0 0.0
          %1182 = vmatprep.subr.mxu0 0.0
          %1183 = vmatpush1.msra.mxu0 0.0
          %1184 = vmatprep.mubr.f32.mxu0 0.0
          %v1185 = vand.u32 %v1116, 4294901760
          %v1186 = vsub.f32 %v1116, %v1185
          %v1187 = vand.u32 %v1186, 4294901760
          %v1188 = vsub.f32 %v1186, %v1187
          %v1189 = vand.u32 %v1188, 4294901760
          %1190 = vmatmul.mubr.f32.gmra.mrb[0].mxu0 %v1189
          %v1191 = vpop.f32.mrb[0].mxu0
          %v1192 = vadd.f32 0.0, %v1191
          %v1193 = vpop.f32.mrb[0].mxu0
          %1194 = vdwg.mxu0
          %1195 = vmatprep.subr.mxu0 0.0
          %v1196 = vand.u32 %v1113, 4294901760
          %v1197 = vsub.f32 %v1113, %v1196
          %v1198 = vand.u32 %v1197, 4294901760
          %v1199 = vsub.f32 %v1197, %v1198
          %v1200 = vand.u32 %v1199, 4294901760
          %1201 = vmatpush1.msra.mxu0 %v1200
          %1202 = vmatprep.subr.mxu0 0.0
          %v1203 = vand.u32 %v1114, 4294901760
          %v1204 = vsub.f32 %v1114, %v1203
          %v1205 = vand.u32 %v1204, 4294901760
          %v1206 = vsub.f32 %v1204, %v1205
          %v1207 = vand.u32 %v1206, 4294901760
          %1208 = vmatpush1.msra.mxu0 %v1207
          %1209 = vmatprep.subr.mxu0 0.0
          %1210 = vmatpush1.msra.mxu0 0.0
          %1211 = vmatprep.subr.mxu0 0.0
          %1212 = vmatpush1.msra.mxu0 0.0
          %1213 = vmatprep.subr.mxu0 0.0
          %1214 = vmatpush1.msra.mxu0 0.0
          %1215 = vmatprep.subr.mxu0 0.0
          %1216 = vmatpush1.msra.mxu0 0.0
          %1217 = vmatprep.subr.mxu0 0.0
          %1218 = vmatpush1.msra.mxu0 0.0
          %1219 = vmatprep.subr.mxu0 0.0
          %1220 = vmatpush1.msra.mxu0 0.0
          %1221 = vmatprep.subr.mxu0 0.0
          %1222 = vmatpush1.msra.mxu0 0.0
          %1223 = vmatprep.subr.mxu0 0.0
          %1224 = vmatpush1.msra.mxu0 0.0
          %1225 = vmatprep.subr.mxu0 0.0
          %1226 = vmatpush1.msra.mxu0 0.0
          %1227 = vmatprep.subr.mxu0 0.0
          %1228 = vmatpush1.msra.mxu0 0.0
          %1229 = vmatprep.subr.mxu0 0.0
          %1230 = vmatpush1.msra.mxu0 0.0
          %1231 = vmatprep.subr.mxu0 0.0
          %1232 = vmatpush1.msra.mxu0 0.0
          %1233 = vmatprep.subr.mxu0 0.0
          %1234 = vmatpush1.msra.mxu0 0.0
          %1235 = vmatprep.subr.mxu0 0.0
          %1236 = vmatpush1.msra.mxu0 0.0
          %1237 = vmatprep.subr.mxu0 0.0
          %1238 = vmatpush1.msra.mxu0 0.0
          %1239 = vmatprep.subr.mxu0 0.0
          %1240 = vmatpush1.msra.mxu0 0.0
          %1241 = vmatprep.subr.mxu0 0.0
          %1242 = vmatpush1.msra.mxu0 0.0
          %1243 = vmatprep.subr.mxu0 0.0
          %1244 = vmatpush1.msra.mxu0 0.0
          %1245 = vmatprep.subr.mxu0 0.0
          %1246 = vmatpush1.msra.mxu0 0.0
          %1247 = vmatprep.subr.mxu0 0.0
          %1248 = vmatpush1.msra.mxu0 0.0
          %1249 = vmatprep.subr.mxu0 0.0
          %1250 = vmatpush1.msra.mxu0 0.0
          %1251 = vmatprep.subr.mxu0 0.0
          %1252 = vmatpush1.msra.mxu0 0.0
          %1253 = vmatprep.subr.mxu0 0.0
          %1254 = vmatpush1.msra.mxu0 0.0
          %1255 = vmatprep.subr.mxu0 0.0
          %1256 = vmatpush1.msra.mxu0 0.0
          %1257 = vmatprep.subr.mxu0 0.0
          %1258 = vmatpush1.msra.mxu0 0.0
          %1259 = vmatprep.subr.mxu0 0.0
          %1260 = vmatpush1.msra.mxu0 0.0
          %1261 = vmatprep.subr.mxu0 0.0
          %1262 = vmatpush1.msra.mxu0 0.0
          %1263 = vmatprep.subr.mxu0 0.0
          %1264 = vmatpush1.msra.mxu0 0.0
          %1265 = vmatprep.subr.mxu0 0.0
          %1266 = vmatpush1.msra.mxu0 0.0
          %1267 = vmatprep.subr.mxu0 0.0
          %1268 = vmatpush1.msra.mxu0 0.0
          %1269 = vmatprep.mubr.f32.mxu0 0.0
          %v1270 = vand.u32 %v1116, 4294901760
          %1271 = vmatmul.mubr.f32.gmra.mrb[0].mxu0 %v1270
          %v1272 = vpop.f32.mrb[0].mxu0
          %v1273 = vadd.f32 %v1192, %v1272
          %v1274 = vpop.f32.mrb[0].mxu0
          %1275 = vdwg.mxu0
          %1276 = vmatprep.subr.mxu0 0.0
          %v1277 = vand.u32 %v1113, 4294901760
          %v1278 = vsub.f32 %v1113, %v1277
          %1279 = vmatpush1.msra.mxu0 %v1278
          %1280 = vmatprep.subr.mxu0 0.0
          %v1281 = vand.u32 %v1114, 4294901760
          %v1282 = vsub.f32 %v1114, %v1281
          %1283 = vmatpush1.msra.mxu0 %v1282
          %1284 = vmatprep.subr.mxu0 0.0
          %1285 = vmatpush1.msra.mxu0 0.0
          %1286 = vmatprep.subr.mxu0 0.0
          %1287 = vmatpush1.msra.mxu0 0.0
          %1288 = vmatprep.subr.mxu0 0.0
          %1289 = vmatpush1.msra.mxu0 0.0
          %1290 = vmatprep.subr.mxu0 0.0
          %1291 = vmatpush1.msra.mxu0 0.0
          %1292 = vmatprep.subr.mxu0 0.0
          %1293 = vmatpush1.msra.mxu0 0.0
          %1294 = vmatprep.subr.mxu0 0.0
          %1295 = vmatpush1.msra.mxu0 0.0
          %1296 = vmatprep.subr.mxu0 0.0
          %1297 = vmatpush1.msra.mxu0 0.0
          %1298 = vmatprep.subr.mxu0 0.0
          %1299 = vmatpush1.msra.mxu0 0.0
          %1300 = vmatprep.subr.mxu0 0.0
          %1301 = vmatpush1.msra.mxu0 0.0
          %1302 = vmatprep.subr.mxu0 0.0
          %1303 = vmatpush1.msra.mxu0 0.0
          %1304 = vmatprep.subr.mxu0 0.0
          %1305 = vmatpush1.msra.mxu0 0.0
          %1306 = vmatprep.subr.mxu0 0.0
          %1307 = vmatpush1.msra.mxu0 0.0
          %1308 = vmatprep.subr.mxu0 0.0
          %1309 = vmatpush1.msra.mxu0 0.0
          %1310 = vmatprep.subr.mxu0 0.0
          %1311 = vmatpush1.msra.mxu0 0.0
          %1312 = vmatprep.subr.mxu0 0.0
          %1313 = vmatpush1.msra.mxu0 0.0
          %1314 = vmatprep.subr.mxu0 0.0
          %1315 = vmatpush1.msra.mxu0 0.0
          %1316 = vmatprep.subr.mxu0 0.0
          %1317 = vmatpush1.msra.mxu0 0.0
          %1318 = vmatprep.subr.mxu0 0.0
          %1319 = vmatpush1.msra.mxu0 0.0
          %1320 = vmatprep.subr.mxu0 0.0
          %1321 = vmatpush1.msra.mxu0 0.0
          %1322 = vmatprep.subr.mxu0 0.0
          %1323 = vmatpush1.msra.mxu0 0.0
          %1324 = vmatprep.subr.mxu0 0.0
          %1325 = vmatpush1.msra.mxu0 0.0
          %1326 = vmatprep.subr.mxu0 0.0
          %1327 = vmatpush1.msra.mxu0 0.0
          %1328 = vmatprep.subr.mxu0 0.0
          %1329 = vmatpush1.msra.mxu0 0.0
          %1330 = vmatprep.subr.mxu0 0.0
          %1331 = vmatpush1.msra.mxu0 0.0
          %1332 = vmatprep.subr.mxu0 0.0
          %1333 = vmatpush1.msra.mxu0 0.0
          %1334 = vmatprep.subr.mxu0 0.0
          %1335 = vmatpush1.msra.mxu0 0.0
          %1336 = vmatprep.subr.mxu0 0.0
          %1337 = vmatpush1.msra.mxu0 0.0
          %1338 = vmatprep.subr.mxu0 0.0
          %1339 = vmatpush1.msra.mxu0 0.0
          %1340 = vmatprep.subr.mxu0 0.0
          %1341 = vmatpush1.msra.mxu0 0.0
          %1342 = vmatprep.subr.mxu0 0.0
          %1343 = vmatpush1.msra.mxu0 0.0
          %1344 = vmatprep.mubr.f32.mxu0 0.0
          %v1345 = vand.u32 %v1116, 4294901760
          %v1346 = vsub.f32 %v1116, %v1345
          %1347 = vmatmul.mubr.f32.gmra.mrb[0].mxu0 %v1346
          %v1348 = vpop.f32.mrb[0].mxu0
          %v1349 = vadd.f32 %v1273, %v1348
          %v1350 = vpop.f32.mrb[0].mxu0
          %1351 = vdwg.mxu0
          %1352 = vmatprep.subr.mxu0 0.0
          %v1353 = vand.u32 %v1113, 4294901760
          %1354 = vmatpush1.msra.mxu0 %v1353
          %1355 = vmatprep.subr.mxu0 0.0
          %v1356 = vand.u32 %v1114, 4294901760
          %1357 = vmatpush1.msra.mxu0 %v1356
          %1358 = vmatprep.subr.mxu0 0.0
          %1359 = vmatpush1.msra.mxu0 0.0
          %1360 = vmatprep.subr.mxu0 0.0
          %1361 = vmatpush1.msra.mxu0 0.0
          %1362 = vmatprep.subr.mxu0 0.0
          %1363 = vmatpush1.msra.mxu0 0.0
          %1364 = vmatprep.subr.mxu0 0.0
          %1365 = vmatpush1.msra.mxu0 0.0
          %1366 = vmatprep.subr.mxu0 0.0
          %1367 = vmatpush1.msra.mxu0 0.0
          %1368 = vmatprep.subr.mxu0 0.0
          %1369 = vmatpush1.msra.mxu0 0.0
          %1370 = vmatprep.subr.mxu0 0.0
          %1371 = vmatpush1.msra.mxu0 0.0
          %1372 = vmatprep.subr.mxu0 0.0
          %1373 = vmatpush1.msra.mxu0 0.0
          %1374 = vmatprep.subr.mxu0 0.0
          %1375 = vmatpush1.msra.mxu0 0.0
          %1376 = vmatprep.subr.mxu0 0.0
          %1377 = vmatpush1.msra.mxu0 0.0
          %1378 = vmatprep.subr.mxu0 0.0
          %1379 = vmatpush1.msra.mxu0 0.0
          %1380 = vmatprep.subr.mxu0 0.0
          %1381 = vmatpush1.msra.mxu0 0.0
          %1382 = vmatprep.subr.mxu0 0.0
          %1383 = vmatpush1.msra.mxu0 0.0
          %1384 = vmatprep.subr.mxu0 0.0
          %1385 = vmatpush1.msra.mxu0 0.0
          %1386 = vmatprep.subr.mxu0 0.0
          %1387 = vmatpush1.msra.mxu0 0.0
          %1388 = vmatprep.subr.mxu0 0.0
          %1389 = vmatpush1.msra.mxu0 0.0
          %1390 = vmatprep.subr.mxu0 0.0
          %1391 = vmatpush1.msra.mxu0 0.0
          %1392 = vmatprep.subr.mxu0 0.0
          %1393 = vmatpush1.msra.mxu0 0.0
          %1394 = vmatprep.subr.mxu0 0.0
          %1395 = vmatpush1.msra.mxu0 0.0
          %1396 = vmatprep.subr.mxu0 0.0
          %1397 = vmatpush1.msra.mxu0 0.0
          %1398 = vmatprep.subr.mxu0 0.0
          %1399 = vmatpush1.msra.mxu0 0.0
          %1400 = vmatprep.subr.mxu0 0.0
          %1401 = vmatpush1.msra.mxu0 0.0
          %1402 = vmatprep.subr.mxu0 0.0
          %1403 = vmatpush1.msra.mxu0 0.0
          %1404 = vmatprep.subr.mxu0 0.0
          %1405 = vmatpush1.msra.mxu0 0.0
          %1406 = vmatprep.subr.mxu0 0.0
          %1407 = vmatpush1.msra.mxu0 0.0
          %1408 = vmatprep.subr.mxu0 0.0
          %1409 = vmatpush1.msra.mxu0 0.0
          %1410 = vmatprep.subr.mxu0 0.0
          %1411 = vmatpush1.msra.mxu0 0.0
          %1412 = vmatprep.subr.mxu0 0.0
          %1413 = vmatpush1.msra.mxu0 0.0
          %1414 = vmatprep.subr.mxu0 0.0
          %1415 = vmatpush1.msra.mxu0 0.0
          %1416 = vmatprep.subr.mxu0 0.0
          %1417 = vmatpush1.msra.mxu0 0.0
          %1418 = vmatprep.mubr.f32.mxu0 0.0
          %v1419 = vand.u32 %v1116, 4294901760
          %v1420 = vsub.f32 %v1116, %v1419
          %v1421 = vand.u32 %v1420, 4294901760
          %1422 = vmatmul.mubr.f32.gmra.mrb[0].mxu0 %v1421
          %v1423 = vpop.f32.mrb[0].mxu0
          %v1424 = vadd.f32 %v1349, %v1423
          %v1425 = vpop.f32.mrb[0].mxu0
          %1426 = vdwg.mxu0
          %1427 = vmatprep.subr.mxu0 0.0
          %v1428 = vand.u32 %v1113, 4294901760
          %v1429 = vsub.f32 %v1113, %v1428
          %v1430 = vand.u32 %v1429, 4294901760
          %1431 = vmatpush1.msra.mxu0 %v1430
          %1432 = vmatprep.subr.mxu0 0.0
          %v1433 = vand.u32 %v1114, 4294901760
          %v1434 = vsub.f32 %v1114, %v1433
          %v1435 = vand.u32 %v1434, 4294901760
          %1436 = vmatpush1.msra.mxu0 %v1435
          %1437 = vmatprep.subr.mxu0 0.0
          %1438 = vmatpush1.msra.mxu0 0.0
          %1439 = vmatprep.subr.mxu0 0.0
          %1440 = vmatpush1.msra.mxu0 0.0
          %1441 = vmatprep.subr.mxu0 0.0
          %1442 = vmatpush1.msra.mxu0 0.0
          %1443 = vmatprep.subr.mxu0 0.0
          %1444 = vmatpush1.msra.mxu0 0.0
          %1445 = vmatprep.subr.mxu0 0.0
          %1446 = vmatpush1.msra.mxu0 0.0
          %1447 = vmatprep.subr.mxu0 0.0
          %1448 = vmatpush1.msra.mxu0 0.0
          %1449 = vmatprep.subr.mxu0 0.0
          %1450 = vmatpush1.msra.mxu0 0.0
          %1451 = vmatprep.subr.mxu0 0.0
          %1452 = vmatpush1.msra.mxu0 0.0
          %1453 = vmatprep.subr.mxu0 0.0
          %1454 = vmatpush1.msra.mxu0 0.0
          %1455 = vmatprep.subr.mxu0 0.0
          %1456 = vmatpush1.msra.mxu0 0.0
          %1457 = vmatprep.subr.mxu0 0.0
          %1458 = vmatpush1.msra.mxu0 0.0
          %1459 = vmatprep.subr.mxu0 0.0
          %1460 = vmatpush1.msra.mxu0 0.0
          %1461 = vmatprep.subr.mxu0 0.0
          %1462 = vmatpush1.msra.mxu0 0.0
          %1463 = vmatprep.subr.mxu0 0.0
          %1464 = vmatpush1.msra.mxu0 0.0
          %1465 = vmatprep.subr.mxu0 0.0
          %1466 = vmatpush1.msra.mxu0 0.0
          %1467 = vmatprep.subr.mxu0 0.0
          %1468 = vmatpush1.msra.mxu0 0.0
          %1469 = vmatprep.subr.mxu0 0.0
          %1470 = vmatpush1.msra.mxu0 0.0
          %1471 = vmatprep.subr.mxu0 0.0
          %1472 = vmatpush1.msra.mxu0 0.0
          %1473 = vmatprep.subr.mxu0 0.0
          %1474 = vmatpush1.msra.mxu0 0.0
          %1475 = vmatprep.subr.mxu0 0.0
          %1476 = vmatpush1.msra.mxu0 0.0
          %1477 = vmatprep.subr.mxu0 0.0
          %1478 = vmatpush1.msra.mxu0 0.0
          %1479 = vmatprep.subr.mxu0 0.0
          %1480 = vmatpush1.msra.mxu0 0.0
          %1481 = vmatprep.subr.mxu0 0.0
          %1482 = vmatpush1.msra.mxu0 0.0
          %1483 = vmatprep.subr.mxu0 0.0
          %1484 = vmatpush1.msra.mxu0 0.0
          %1485 = vmatprep.subr.mxu0 0.0
          %1486 = vmatpush1.msra.mxu0 0.0
          %1487 = vmatprep.subr.mxu0 0.0
          %1488 = vmatpush1.msra.mxu0 0.0
          %1489 = vmatprep.subr.mxu0 0.0
          %1490 = vmatpush1.msra.mxu0 0.0
          %1491 = vmatprep.subr.mxu0 0.0
          %1492 = vmatpush1.msra.mxu0 0.0
          %1493 = vmatprep.subr.mxu0 0.0
          %1494 = vmatpush1.msra.mxu0 0.0
          %1495 = vmatprep.subr.mxu0 0.0
          %1496 = vmatpush1.msra.mxu0 0.0
          %1497 = vmatprep.mubr.f32.mxu0 0.0
          %v1498 = vand.u32 %v1116, 4294901760
          %1499 = vmatmul.mubr.f32.gmra.mrb[0].mxu0 %v1498
          %v1500 = vpop.f32.mrb[0].mxu0
          %v1501 = vadd.f32 %v1424, %v1500
          %v1502 = vpop.f32.mrb[0].mxu0
          %1503 = vdwg.mxu0
          %1504 = vmatprep.subr.mxu0 0.0
          %v1505 = vand.u32 %v1113, 4294901760
          %1506 = vmatpush1.msra.mxu0 %v1505
          %1507 = vmatprep.subr.mxu0 0.0
          %v1508 = vand.u32 %v1114, 4294901760
          %1509 = vmatpush1.msra.mxu0 %v1508
          %1510 = vmatprep.subr.mxu0 0.0
          %1511 = vmatpush1.msra.mxu0 0.0
          %1512 = vmatprep.subr.mxu0 0.0
          %1513 = vmatpush1.msra.mxu0 0.0
          %1514 = vmatprep.subr.mxu0 0.0
          %1515 = vmatpush1.msra.mxu0 0.0
          %1516 = vmatprep.subr.mxu0 0.0
          %1517 = vmatpush1.msra.mxu0 0.0
          %1518 = vmatprep.subr.mxu0 0.0
          %1519 = vmatpush1.msra.mxu0 0.0
          %1520 = vmatprep.subr.mxu0 0.0
          %1521 = vmatpush1.msra.mxu0 0.0
          %1522 = vmatprep.subr.mxu0 0.0
          %1523 = vmatpush1.msra.mxu0 0.0
          %1524 = vmatprep.subr.mxu0 0.0
          %1525 = vmatpush1.msra.mxu0 0.0
          %1526 = vmatprep.subr.mxu0 0.0
          %1527 = vmatpush1.msra.mxu0 0.0
          %1528 = vmatprep.subr.mxu0 0.0
          %1529 = vmatpush1.msra.mxu0 0.0
          %1530 = vmatprep.subr.mxu0 0.0
          %1531 = vmatpush1.msra.mxu0 0.0
          %1532 = vmatprep.subr.mxu0 0.0
          %1533 = vmatpush1.msra.mxu0 0.0
          %1534 = vmatprep.subr.mxu0 0.0
          %1535 = vmatpush1.msra.mxu0 0.0
          %1536 = vmatprep.subr.mxu0 0.0
          %1537 = vmatpush1.msra.mxu0 0.0
          %1538 = vmatprep.subr.mxu0 0.0
          %1539 = vmatpush1.msra.mxu0 0.0
          %1540 = vmatprep.subr.mxu0 0.0
          %1541 = vmatpush1.msra.mxu0 0.0
          %1542 = vmatprep.subr.mxu0 0.0
          %1543 = vmatpush1.msra.mxu0 0.0
          %1544 = vmatprep.subr.mxu0 0.0
          %1545 = vmatpush1.msra.mxu0 0.0
          %1546 = vmatprep.subr.mxu0 0.0
          %1547 = vmatpush1.msra.mxu0 0.0
          %1548 = vmatprep.subr.mxu0 0.0
          %1549 = vmatpush1.msra.mxu0 0.0
          %1550 = vmatprep.subr.mxu0 0.0
          %1551 = vmatpush1.msra.mxu0 0.0
          %1552 = vmatprep.subr.mxu0 0.0
          %1553 = vmatpush1.msra.mxu0 0.0
          %1554 = vmatprep.subr.mxu0 0.0
          %1555 = vmatpush1.msra.mxu0 0.0
          %1556 = vmatprep.subr.mxu0 0.0
          %1557 = vmatpush1.msra.mxu0 0.0
          %1558 = vmatprep.subr.mxu0 0.0
          %1559 = vmatpush1.msra.mxu0 0.0
          %1560 = vmatprep.subr.mxu0 0.0
          %1561 = vmatpush1.msra.mxu0 0.0
          %1562 = vmatprep.subr.mxu0 0.0
          %1563 = vmatpush1.msra.mxu0 0.0
          %1564 = vmatprep.subr.mxu0 0.0
          %1565 = vmatpush1.msra.mxu0 0.0
          %1566 = vmatprep.subr.mxu0 0.0
          %1567 = vmatpush1.msra.mxu0 0.0
          %1568 = vmatprep.subr.mxu0 0.0
          %1569 = vmatpush1.msra.mxu0 0.0
          %1570 = vmatprep.mubr.f32.mxu0 0.0
          %v1571 = vand.u32 %v1116, 4294901760
          %1572 = vmatmul.mubr.f32.gmra.mrb[0].mxu0 %v1571
          %v1573 = vpop.f32.mrb[0].mxu0
          %v1574 = vadd.f32 %v1501, %v1573
          %v1575 = vpop.f32.mrb[0].mxu0
          %1576 = vdwg.mxu0
          %s1577 = smul.u32 %s1106, 8
          %s1578 = scalar_lea.vmem %s288, %s1577 [#allocation8]
          %1579 = vst.msk [vmem:[%s1578] sm:$0xff] %vm1096, %v1574
        $region49: #{_lowpass_pair_pallas.1} parent=35 // loop_footer
          %s1110 = sadd.s32 1, %s1106
        $region50: #{_lowpass_pair_pallas.1} parent=35 // loop_footer_branch
          %1105 = sbr.rel target = $region46
        $region51: #{_lowpass_pair_pallas.1} parent=35 // loop_exit
          _
        %v1580 = vld [vmem:[%s259] sm:$0xff]
        %v1581 = vld [vmem:[%s259 + $0x8] sm:$0xff]
        %v1582 = vld [vmem:[%s259 + $0x10] sm:$0xff]
        %v1583 = vld [vmem:[%s259 + $0x18] sm:$0xff]
        %v1584 = vld [vmem:[%s259 + $0x20] sm:$0xff]
        %v1585 = vld [vmem:[%s259 + $0x28] sm:$0xff]
        %v1586 = vld [vmem:[%s259 + $0x30] sm:$0xff]
        %v1587 = vld [vmem:[%s259 + $0x38] sm:$0xff]
        %v1589 = vsel %vm311, %v1580, 0
        %v1592 = vsel %vm311, %v1581, 0
        %v1595 = vsel %vm311, %v1582, 0
        %v1598 = vsel %vm311, %v1583, 0
        %v1601 = vsel %vm311, %v1584, 0
        %v1604 = vsel %vm311, %v1585, 0
        %v1607 = vsel %vm311, %v1586, 0
        %v1610 = vsel %vm311, %v1587, 0
        %1612 = vmatprep.subr.mxu0 0.0
        %v1613 = vand.u32 %v301, 4294901760
        %1614 = vmatpush1.msra.mxu0 %v1613
        %1615 = vmatprep.subr.mxu0 0.0
        %v1616 = vand.u32 %v302, 4294901760
        %1617 = vmatpush1.msra.mxu0 %v1616
        %1618 = vmatprep.subr.mxu0 0.0
        %1619 = vmatpush1.msra.mxu0 0.0
        %1620 = vmatprep.subr.mxu0 0.0
        %1621 = vmatpush1.msra.mxu0 0.0
        %1622 = vmatprep.subr.mxu0 0.0
        %1623 = vmatpush1.msra.mxu0 0.0
        %1624 = vmatprep.subr.mxu0 0.0
        %1625 = vmatpush1.msra.mxu0 0.0
        %1626 = vmatprep.subr.mxu0 0.0
        %1627 = vmatpush1.msra.mxu0 0.0
        %1628 = vmatprep.subr.mxu0 0.0
        %1629 = vmatpush1.msra.mxu0 0.0
        %1630 = vmatprep.subr.mxu0 0.0
        %1631 = vmatpush1.msra.mxu0 0.0
        %1632 = vmatprep.subr.mxu0 0.0
        %1633 = vmatpush1.msra.mxu0 0.0
        %1634 = vmatprep.subr.mxu0 0.0
        %1635 = vmatpush1.msra.mxu0 0.0
        %1636 = vmatprep.subr.mxu0 0.0
        %1637 = vmatpush1.msra.mxu0 0.0
        %1638 = vmatprep.subr.mxu0 0.0
        %1639 = vmatpush1.msra.mxu0 0.0
        %1640 = vmatprep.subr.mxu0 0.0
        %1641 = vmatpush1.msra.mxu0 0.0
        %1642 = vmatprep.subr.mxu0 0.0
        %1643 = vmatpush1.msra.mxu0 0.0
        %1644 = vmatprep.subr.mxu0 0.0
        %1645 = vmatpush1.msra.mxu0 0.0
        %1646 = vmatprep.subr.mxu0 0.0
        %1647 = vmatpush1.msra.mxu0 0.0
        %1648 = vmatprep.subr.mxu0 0.0
        %1649 = vmatpush1.msra.mxu0 0.0
        %1650 = vmatprep.subr.mxu0 0.0
        %1651 = vmatpush1.msra.mxu0 0.0
        %1652 = vmatprep.subr.mxu0 0.0
        %1653 = vmatpush1.msra.mxu0 0.0
        %1654 = vmatprep.subr.mxu0 0.0
        %1655 = vmatpush1.msra.mxu0 0.0
        %1656 = vmatprep.subr.mxu0 0.0
        %1657 = vmatpush1.msra.mxu0 0.0
        %1658 = vmatprep.subr.mxu0 0.0
        %1659 = vmatpush1.msra.mxu0 0.0
        %1660 = vmatprep.subr.mxu0 0.0
        %1661 = vmatpush1.msra.mxu0 0.0
        %1662 = vmatprep.subr.mxu0 0.0
        %1663 = vmatpush1.msra.mxu0 0.0
        %1664 = vmatprep.subr.mxu0 0.0
        %1665 = vmatpush1.msra.mxu0 0.0
        %1666 = vmatprep.subr.mxu0 0.0
        %1667 = vmatpush1.msra.mxu0 0.0
        %1668 = vmatprep.subr.mxu0 0.0
        %1669 = vmatpush1.msra.mxu0 0.0
        %1670 = vmatprep.subr.mxu0 0.0
        %1671 = vmatpush1.msra.mxu0 0.0
        %1672 = vmatprep.subr.mxu0 0.0
        %1673 = vmatpush1.msra.mxu0 0.0
        %1674 = vmatprep.subr.mxu0 0.0
        %1675 = vmatpush1.msra.mxu0 0.0
        %1676 = vmatprep.subr.mxu0 0.0
        %1677 = vmatpush1.msra.mxu0 0.0
        %1678 = vmatprep.mubr.f32.mxu0 0.0
        %v1679 = vand.u32 %v1589, 4294901760
        %v1680 = vsub.f32 %v1589, %v1679
        %v1681 = vand.u32 %v1680, 4294901760
        %v1682 = vsub.f32 %v1680, %v1681
        %v1683 = vand.u32 %v1682, 4294901760
        %1684 = vmatmul.mubr.f32.gmra.mrb[0].mxu0 %v1683
        %v1685 = vpop.f32.mrb[0].mxu0
        %v1686 = vadd.f32 0.0, %v1685
        %v1687 = vpop.f32.mrb[0].mxu0
        %1688 = vmatprep.mubr.f32.mxu0 0.0
        %v1689 = vand.u32 %v1592, 4294901760
        %v1690 = vsub.f32 %v1592, %v1689
        %v1691 = vand.u32 %v1690, 4294901760
        %v1692 = vsub.f32 %v1690, %v1691
        %v1693 = vand.u32 %v1692, 4294901760
        %1694 = vmatmul.mubr.f32.gmra.mrb[0].mxu0 %v1693
        %v1695 = vpop.f32.mrb[0].mxu0
        %v1696 = vadd.f32 0.0, %v1695
        %v1697 = vpop.f32.mrb[0].mxu0
        %1698 = vmatprep.mubr.f32.mxu0 0.0
        %v1699 = vand.u32 %v1595, 4294901760
        %v1700 = vsub.f32 %v1595, %v1699
        %v1701 = vand.u32 %v1700, 4294901760
        %v1702 = vsub.f32 %v1700, %v1701
        %v1703 = vand.u32 %v1702, 4294901760
        %1704 = vmatmul.mubr.f32.gmra.mrb[0].mxu0 %v1703
        %v1705 = vpop.f32.mrb[0].mxu0
        %v1706 = vadd.f32 0.0, %v1705
        %v1707 = vpop.f32.mrb[0].mxu0
        %1708 = vmatprep.mubr.f32.mxu0 0.0
        %v1709 = vand.u32 %v1598, 4294901760
        %v1710 = vsub.f32 %v1598, %v1709
        %v1711 = vand.u32 %v1710, 4294901760
        %v1712 = vsub.f32 %v1710, %v1711
        %v1713 = vand.u32 %v1712, 4294901760
        %1714 = vmatmul.mubr.f32.gmra.mrb[0].mxu0 %v1713
        %v1715 = vpop.f32.mrb[0].mxu0
        %v1716 = vadd.f32 0.0, %v1715
        %v1717 = vpop.f32.mrb[0].mxu0
        %1718 = vmatprep.mubr.f32.mxu0 0.0
        %v1719 = vand.u32 %v1601, 4294901760
        %v1720 = vsub.f32 %v1601, %v1719
        %v1721 = vand.u32 %v1720, 4294901760
        %v1722 = vsub.f32 %v1720, %v1721
        %v1723 = vand.u32 %v1722, 4294901760
        %1724 = vmatmul.mubr.f32.gmra.mrb[0].mxu0 %v1723
        %v1725 = vpop.f32.mrb[0].mxu0
        %v1726 = vadd.f32 0.0, %v1725
        %v1727 = vpop.f32.mrb[0].mxu0
        %1728 = vmatprep.mubr.f32.mxu0 0.0
        %v1729 = vand.u32 %v1604, 4294901760
        %v1730 = vsub.f32 %v1604, %v1729
        %v1731 = vand.u32 %v1730, 4294901760
        %v1732 = vsub.f32 %v1730, %v1731
        %v1733 = vand.u32 %v1732, 4294901760
        %1734 = vmatmul.mubr.f32.gmra.mrb[0].mxu0 %v1733
        %v1735 = vpop.f32.mrb[0].mxu0
        %v1736 = vadd.f32 0.0, %v1735
        %v1737 = vpop.f32.mrb[0].mxu0
        %1738 = vmatprep.mubr.f32.mxu0 0.0
        %v1739 = vand.u32 %v1607, 4294901760
        %v1740 = vsub.f32 %v1607, %v1739
        %v1741 = vand.u32 %v1740, 4294901760
        %v1742 = vsub.f32 %v1740, %v1741
        %v1743 = vand.u32 %v1742, 4294901760
        %1744 = vmatmul.mubr.f32.gmra.mrb[0].mxu0 %v1743
        %v1745 = vpop.f32.mrb[0].mxu0
        %v1746 = vadd.f32 0.0, %v1745
        %v1747 = vpop.f32.mrb[0].mxu0
        %1748 = vmatprep.mubr.f32.mxu0 0.0
        %v1749 = vand.u32 %v1610, 4294901760
        %v1750 = vsub.f32 %v1610, %v1749
        %v1751 = vand.u32 %v1750, 4294901760
        %v1752 = vsub.f32 %v1750, %v1751
        %v1753 = vand.u32 %v1752, 4294901760
        %1754 = vmatmul.mubr.f32.gmra.mrb[0].mxu0 %v1753
        %v1755 = vpop.f32.mrb[0].mxu0
        %v1756 = vadd.f32 0.0, %v1755
        %v1757 = vpop.f32.mrb[0].mxu0
        %1758 = vdwg.mxu0
        %1759 = vmatprep.subr.mxu0 0.0
        %v1760 = vand.u32 %v301, 4294901760
        %v1761 = vsub.f32 %v301, %v1760
        %v1762 = vand.u32 %v1761, 4294901760
        %v1763 = vsub.f32 %v1761, %v1762
        %v1764 = vand.u32 %v1763, 4294901760
        %1765 = vmatpush1.msra.mxu0 %v1764
        %1766 = vmatprep.subr.mxu0 0.0
        %v1767 = vand.u32 %v302, 4294901760
        %v1768 = vsub.f32 %v302, %v1767
        %v1769 = vand.u32 %v1768, 4294901760
        %v1770 = vsub.f32 %v1768, %v1769
        %v1771 = vand.u32 %v1770, 4294901760
        %1772 = vmatpush1.msra.mxu0 %v1771
        %1773 = vmatprep.subr.mxu0 0.0
        %1774 = vmatpush1.msra.mxu0 0.0
        %1775 = vmatprep.subr.mxu0 0.0
        %1776 = vmatpush1.msra.mxu0 0.0
        %1777 = vmatprep.subr.mxu0 0.0
        %1778 = vmatpush1.msra.mxu0 0.0
        %1779 = vmatprep.subr.mxu0 0.0
        %1780 = vmatpush1.msra.mxu0 0.0
        %1781 = vmatprep.subr.mxu0 0.0
        %1782 = vmatpush1.msra.mxu0 0.0
        %1783 = vmatprep.subr.mxu0 0.0
        %1784 = vmatpush1.msra.mxu0 0.0
        %1785 = vmatprep.subr.mxu0 0.0
        %1786 = vmatpush1.msra.mxu0 0.0
        %1787 = vmatprep.subr.mxu0 0.0
        %1788 = vmatpush1.msra.mxu0 0.0
        %1789 = vmatprep.subr.mxu0 0.0
        %1790 = vmatpush1.msra.mxu0 0.0
        %1791 = vmatprep.subr.mxu0 0.0
        %1792 = vmatpush1.msra.mxu0 0.0
        %1793 = vmatprep.subr.mxu0 0.0
        %1794 = vmatpush1.msra.mxu0 0.0
        %1795 = vmatprep.subr.mxu0 0.0
        %1796 = vmatpush1.msra.mxu0 0.0
        %1797 = vmatprep.subr.mxu0 0.0
        %1798 = vmatpush1.msra.mxu0 0.0
        %1799 = vmatprep.subr.mxu0 0.0
        %1800 = vmatpush1.msra.mxu0 0.0
        %1801 = vmatprep.subr.mxu0 0.0
        %1802 = vmatpush1.msra.mxu0 0.0
        %1803 = vmatprep.subr.mxu0 0.0
        %1804 = vmatpush1.msra.mxu0 0.0
        %1805 = vmatprep.subr.mxu0 0.0
        %1806 = vmatpush1.msra.mxu0 0.0
        %1807 = vmatprep.subr.mxu0 0.0
        %1808 = vmatpush1.msra.mxu0 0.0
        %1809 = vmatprep.subr.mxu0 0.0
        %1810 = vmatpush1.msra.mxu0 0.0
        %1811 = vmatprep.subr.mxu0 0.0
        %1812 = vmatpush1.msra.mxu0 0.0
        %1813 = vmatprep.subr.mxu0 0.0
        %1814 = vmatpush1.msra.mxu0 0.0
        %1815 = vmatprep.subr.mxu0 0.0
        %1816 = vmatpush1.msra.mxu0 0.0
        %1817 = vmatprep.subr.mxu0 0.0
        %1818 = vmatpush1.msra.mxu0 0.0
        %1819 = vmatprep.subr.mxu0 0.0
        %1820 = vmatpush1.msra.mxu0 0.0
        %1821 = vmatprep.subr.mxu0 0.0
        %1822 = vmatpush1.msra.mxu0 0.0
        %1823 = vmatprep.subr.mxu0 0.0
        %1824 = vmatpush1.msra.mxu0 0.0
        %1825 = vmatprep.subr.mxu0 0.0
        %1826 = vmatpush1.msra.mxu0 0.0
        %1827 = vmatprep.subr.mxu0 0.0
        %1828 = vmatpush1.msra.mxu0 0.0
        %1829 = vmatprep.subr.mxu0 0.0
        %1830 = vmatpush1.msra.mxu0 0.0
        %1831 = vmatprep.subr.mxu0 0.0
        %1832 = vmatpush1.msra.mxu0 0.0
        %1833 = vmatprep.mubr.f32.mxu0 0.0
        %v1834 = vand.u32 %v1589, 4294901760
        %1835 = vmatmul.mubr.f32.gmra.mrb[0].mxu0 %v1834
        %v1836 = vpop.f32.mrb[0].mxu0
        %v1837 = vadd.f32 %v1686, %v1836
        %v1838 = vpop.f32.mrb[0].mxu0
        %1839 = vmatprep.mubr.f32.mxu0 0.0
        %v1840 = vand.u32 %v1592, 4294901760
        %1841 = vmatmul.mubr.f32.gmra.mrb[0].mxu0 %v1840
        %v1842 = vpop.f32.mrb[0].mxu0
        %v1843 = vadd.f32 %v1696, %v1842
        %v1844 = vpop.f32.mrb[0].mxu0
        %1845 = vmatprep.mubr.f32.mxu0 0.0
        %v1846 = vand.u32 %v1595, 4294901760
        %1847 = vmatmul.mubr.f32.gmra.mrb[0].mxu0 %v1846
        %v1848 = vpop.f32.mrb[0].mxu0
        %v1849 = vadd.f32 %v1706, %v1848
        %v1850 = vpop.f32.mrb[0].mxu0
        %1851 = vmatprep.mubr.f32.mxu0 0.0
        %v1852 = vand.u32 %v1598, 4294901760
        %1853 = vmatmul.mubr.f32.gmra.mrb[0].mxu0 %v1852
        %v1854 = vpop.f32.mrb[0].mxu0
        %v1855 = vadd.f32 %v1716, %v1854
        %v1856 = vpop.f32.mrb[0].mxu0
        %1857 = vmatprep.mubr.f32.mxu0 0.0
        %v1858 = vand.u32 %v1601, 4294901760
        %1859 = vmatmul.mubr.f32.gmra.mrb[0].mxu0 %v1858
        %v1860 = vpop.f32.mrb[0].mxu0
        %v1861 = vadd.f32 %v1726, %v1860
        %v1862 = vpop.f32.mrb[0].mxu0
        %1863 = vmatprep.mubr.f32.mxu0 0.0
        %v1864 = vand.u32 %v1604, 4294901760
        %1865 = vmatmul.mubr.f32.gmra.mrb[0].mxu0 %v1864
        %v1866 = vpop.f32.mrb[0].mxu0
        %v1867 = vadd.f32 %v1736, %v1866
        %v1868 = vpop.f32.mrb[0].mxu0
        %1869 = vmatprep.mubr.f32.mxu0 0.0
        %v1870 = vand.u32 %v1607, 4294901760
        %1871 = vmatmul.mubr.f32.gmra.mrb[0].mxu0 %v1870
        %v1872 = vpop.f32.mrb[0].mxu0
        %v1873 = vadd.f32 %v1746, %v1872
        %v1874 = vpop.f32.mrb[0].mxu0
        %1875 = vmatprep.mubr.f32.mxu0 0.0
        %v1876 = vand.u32 %v1610, 4294901760
        %1877 = vmatmul.mubr.f32.gmra.mrb[0].mxu0 %v1876
        %v1878 = vpop.f32.mrb[0].mxu0
        %v1879 = vadd.f32 %v1756, %v1878
        %v1880 = vpop.f32.mrb[0].mxu0
        %1881 = vdwg.mxu0
        %1882 = vmatprep.subr.mxu0 0.0
        %v1883 = vand.u32 %v301, 4294901760
        %v1884 = vsub.f32 %v301, %v1883
        %1885 = vmatpush1.msra.mxu0 %v1884
        %1886 = vmatprep.subr.mxu0 0.0
        %v1887 = vand.u32 %v302, 4294901760
        %v1888 = vsub.f32 %v302, %v1887
        %1889 = vmatpush1.msra.mxu0 %v1888
        %1890 = vmatprep.subr.mxu0 0.0
        %1891 = vmatpush1.msra.mxu0 0.0
        %1892 = vmatprep.subr.mxu0 0.0
        %1893 = vmatpush1.msra.mxu0 0.0
        %1894 = vmatprep.subr.mxu0 0.0
        %1895 = vmatpush1.msra.mxu0 0.0
        %1896 = vmatprep.subr.mxu0 0.0
        %1897 = vmatpush1.msra.mxu0 0.0
        %1898 = vmatprep.subr.mxu0 0.0
        %1899 = vmatpush1.msra.mxu0 0.0
        %1900 = vmatprep.subr.mxu0 0.0
        %1901 = vmatpush1.msra.mxu0 0.0
        %1902 = vmatprep.subr.mxu0 0.0
        %1903 = vmatpush1.msra.mxu0 0.0
        %1904 = vmatprep.subr.mxu0 0.0
        %1905 = vmatpush1.msra.mxu0 0.0
        %1906 = vmatprep.subr.mxu0 0.0
        %1907 = vmatpush1.msra.mxu0 0.0
        %1908 = vmatprep.subr.mxu0 0.0
        %1909 = vmatpush1.msra.mxu0 0.0
        %1910 = vmatprep.subr.mxu0 0.0
        %1911 = vmatpush1.msra.mxu0 0.0
        %1912 = vmatprep.subr.mxu0 0.0
        %1913 = vmatpush1.msra.mxu0 0.0
        %1914 = vmatprep.subr.mxu0 0.0
        %1915 = vmatpush1.msra.mxu0 0.0
        %1916 = vmatprep.subr.mxu0 0.0
        %1917 = vmatpush1.msra.mxu0 0.0
        %1918 = vmatprep.subr.mxu0 0.0
        %1919 = vmatpush1.msra.mxu0 0.0
        %1920 = vmatprep.subr.mxu0 0.0
        %1921 = vmatpush1.msra.mxu0 0.0
        %1922 = vmatprep.subr.mxu0 0.0
        %1923 = vmatpush1.msra.mxu0 0.0
        %1924 = vmatprep.subr.mxu0 0.0
        %1925 = vmatpush1.msra.mxu0 0.0
        %1926 = vmatprep.subr.mxu0 0.0
        %1927 = vmatpush1.msra.mxu0 0.0
        %1928 = vmatprep.subr.mxu0 0.0
        %1929 = vmatpush1.msra.mxu0 0.0
        %1930 = vmatprep.subr.mxu0 0.0
        %1931 = vmatpush1.msra.mxu0 0.0
        %1932 = vmatprep.subr.mxu0 0.0
        %1933 = vmatpush1.msra.mxu0 0.0
        %1934 = vmatprep.subr.mxu0 0.0
        %1935 = vmatpush1.msra.mxu0 0.0
        %1936 = vmatprep.subr.mxu0 0.0
        %1937 = vmatpush1.msra.mxu0 0.0
        %1938 = vmatprep.subr.mxu0 0.0
        %1939 = vmatpush1.msra.mxu0 0.0
        %1940 = vmatprep.subr.mxu0 0.0
        %1941 = vmatpush1.msra.mxu0 0.0
        %1942 = vmatprep.subr.mxu0 0.0
        %1943 = vmatpush1.msra.mxu0 0.0
        %1944 = vmatprep.subr.mxu0 0.0
        %1945 = vmatpush1.msra.mxu0 0.0
        %1946 = vmatprep.subr.mxu0 0.0
        %1947 = vmatpush1.msra.mxu0 0.0
        %1948 = vmatprep.subr.mxu0 0.0
        %1949 = vmatpush1.msra.mxu0 0.0
        %1950 = vmatprep.mubr.f32.mxu0 0.0
        %v1951 = vand.u32 %v1589, 4294901760
        %v1952 = vsub.f32 %v1589, %v1951
        %1953 = vmatmul.mubr.f32.gmra.mrb[0].mxu0 %v1952
        %v1954 = vpop.f32.mrb[0].mxu0
        %v1955 = vadd.f32 %v1837, %v1954
        %v1956 = vpop.f32.mrb[0].mxu0
        %1957 = vmatprep.mubr.f32.mxu0 0.0
        %v1958 = vand.u32 %v1592, 4294901760
        %v1959 = vsub.f32 %v1592, %v1958
        %1960 = vmatmul.mubr.f32.gmra.mrb[0].mxu0 %v1959
        %v1961 = vpop.f32.mrb[0].mxu0
        %v1962 = vadd.f32 %v1843, %v1961
        %v1963 = vpop.f32.mrb[0].mxu0
        %1964 = vmatprep.mubr.f32.mxu0 0.0
        %v1965 = vand.u32 %v1595, 4294901760
        %v1966 = vsub.f32 %v1595, %v1965
        %1967 = vmatmul.mubr.f32.gmra.mrb[0].mxu0 %v1966
        %v1968 = vpop.f32.mrb[0].mxu0
        %v1969 = vadd.f32 %v1849, %v1968
        %v1970 = vpop.f32.mrb[0].mxu0
        %1971 = vmatprep.mubr.f32.mxu0 0.0
        %v1972 = vand.u32 %v1598, 4294901760
        %v1973 = vsub.f32 %v1598, %v1972
        %1974 = vmatmul.mubr.f32.gmra.mrb[0].mxu0 %v1973
        %v1975 = vpop.f32.mrb[0].mxu0
        %v1976 = vadd.f32 %v1855, %v1975
        %v1977 = vpop.f32.mrb[0].mxu0
        %1978 = vmatprep.mubr.f32.mxu0 0.0
        %v1979 = vand.u32 %v1601, 4294901760
        %v1980 = vsub.f32 %v1601, %v1979
        %1981 = vmatmul.mubr.f32.gmra.mrb[0].mxu0 %v1980
        %v1982 = vpop.f32.mrb[0].mxu0
        %v1983 = vadd.f32 %v1861, %v1982
        %v1984 = vpop.f32.mrb[0].mxu0
        %1985 = vmatprep.mubr.f32.mxu0 0.0
        %v1986 = vand.u32 %v1604, 4294901760
        %v1987 = vsub.f32 %v1604, %v1986
        %1988 = vmatmul.mubr.f32.gmra.mrb[0].mxu0 %v1987
        %v1989 = vpop.f32.mrb[0].mxu0
        %v1990 = vadd.f32 %v1867, %v1989
        %v1991 = vpop.f32.mrb[0].mxu0
        %1992 = vmatprep.mubr.f32.mxu0 0.0
        %v1993 = vand.u32 %v1607, 4294901760
        %v1994 = vsub.f32 %v1607, %v1993
        %1995 = vmatmul.mubr.f32.gmra.mrb[0].mxu0 %v1994
        %v1996 = vpop.f32.mrb[0].mxu0
        %v1997 = vadd.f32 %v1873, %v1996
        %v1998 = vpop.f32.mrb[0].mxu0
        %1999 = vmatprep.mubr.f32.mxu0 0.0
        %v2000 = vand.u32 %v1610, 4294901760
        %v2001 = vsub.f32 %v1610, %v2000
        %2002 = vmatmul.mubr.f32.gmra.mrb[0].mxu0 %v2001
        %v2003 = vpop.f32.mrb[0].mxu0
        %v2004 = vadd.f32 %v1879, %v2003
        %v2005 = vpop.f32.mrb[0].mxu0
        %2006 = vdwg.mxu0
        %2007 = vmatprep.subr.mxu0 0.0
        %v2008 = vand.u32 %v301, 4294901760
        %2009 = vmatpush1.msra.mxu0 %v2008
        %2010 = vmatprep.subr.mxu0 0.0
        %v2011 = vand.u32 %v302, 4294901760
        %2012 = vmatpush1.msra.mxu0 %v2011
        %2013 = vmatprep.subr.mxu0 0.0
        %2014 = vmatpush1.msra.mxu0 0.0
        %2015 = vmatprep.subr.mxu0 0.0
        %2016 = vmatpush1.msra.mxu0 0.0
        %2017 = vmatprep.subr.mxu0 0.0
        %2018 = vmatpush1.msra.mxu0 0.0
        %2019 = vmatprep.subr.mxu0 0.0
        %2020 = vmatpush1.msra.mxu0 0.0
        %2021 = vmatprep.subr.mxu0 0.0
        %2022 = vmatpush1.msra.mxu0 0.0
        %2023 = vmatprep.subr.mxu0 0.0
        %2024 = vmatpush1.msra.mxu0 0.0
        %2025 = vmatprep.subr.mxu0 0.0
        %2026 = vmatpush1.msra.mxu0 0.0
        %2027 = vmatprep.subr.mxu0 0.0
        %2028 = vmatpush1.msra.mxu0 0.0
        %2029 = vmatprep.subr.mxu0 0.0
        %2030 = vmatpush1.msra.mxu0 0.0
        %2031 = vmatprep.subr.mxu0 0.0
        %2032 = vmatpush1.msra.mxu0 0.0
        %2033 = vmatprep.subr.mxu0 0.0
        %2034 = vmatpush1.msra.mxu0 0.0
        %2035 = vmatprep.subr.mxu0 0.0
        %2036 = vmatpush1.msra.mxu0 0.0
        %2037 = vmatprep.subr.mxu0 0.0
        %2038 = vmatpush1.msra.mxu0 0.0
        %2039 = vmatprep.subr.mxu0 0.0
        %2040 = vmatpush1.msra.mxu0 0.0
        %2041 = vmatprep.subr.mxu0 0.0
        %2042 = vmatpush1.msra.mxu0 0.0
        %2043 = vmatprep.subr.mxu0 0.0
        %2044 = vmatpush1.msra.mxu0 0.0
        %2045 = vmatprep.subr.mxu0 0.0
        %2046 = vmatpush1.msra.mxu0 0.0
        %2047 = vmatprep.subr.mxu0 0.0
        %2048 = vmatpush1.msra.mxu0 0.0
        %2049 = vmatprep.subr.mxu0 0.0
        %2050 = vmatpush1.msra.mxu0 0.0
        %2051 = vmatprep.subr.mxu0 0.0
        %2052 = vmatpush1.msra.mxu0 0.0
        %2053 = vmatprep.subr.mxu0 0.0
        %2054 = vmatpush1.msra.mxu0 0.0
        %2055 = vmatprep.subr.mxu0 0.0
        %2056 = vmatpush1.msra.mxu0 0.0
        %2057 = vmatprep.subr.mxu0 0.0
        %2058 = vmatpush1.msra.mxu0 0.0
        %2059 = vmatprep.subr.mxu0 0.0
        %2060 = vmatpush1.msra.mxu0 0.0
        %2061 = vmatprep.subr.mxu0 0.0
        %2062 = vmatpush1.msra.mxu0 0.0
        %2063 = vmatprep.subr.mxu0 0.0
        %2064 = vmatpush1.msra.mxu0 0.0
        %2065 = vmatprep.subr.mxu0 0.0
        %2066 = vmatpush1.msra.mxu0 0.0
        %2067 = vmatprep.subr.mxu0 0.0
        %2068 = vmatpush1.msra.mxu0 0.0
        %2069 = vmatprep.subr.mxu0 0.0
        %2070 = vmatpush1.msra.mxu0 0.0
        %2071 = vmatprep.subr.mxu0 0.0
        %2072 = vmatpush1.msra.mxu0 0.0
        %2073 = vmatprep.mubr.f32.mxu0 0.0
        %v2074 = vand.u32 %v1589, 4294901760
        %v2075 = vsub.f32 %v1589, %v2074
        %v2076 = vand.u32 %v2075, 4294901760
        %2077 = vmatmul.mubr.f32.gmra.mrb[0].mxu0 %v2076
        %v2078 = vpop.f32.mrb[0].mxu0
        %v2079 = vadd.f32 %v1955, %v2078
        %v2080 = vpop.f32.mrb[0].mxu0
        %2081 = vmatprep.mubr.f32.mxu0 0.0
        %v2082 = vand.u32 %v1592, 4294901760
        %v2083 = vsub.f32 %v1592, %v2082
        %v2084 = vand.u32 %v2083, 4294901760
        %2085 = vmatmul.mubr.f32.gmra.mrb[0].mxu0 %v2084
        %v2086 = vpop.f32.mrb[0].mxu0
        %v2087 = vadd.f32 %v1962, %v2086
        %v2088 = vpop.f32.mrb[0].mxu0
        %2089 = vmatprep.mubr.f32.mxu0 0.0
        %v2090 = vand.u32 %v1595, 4294901760
        %v2091 = vsub.f32 %v1595, %v2090
        %v2092 = vand.u32 %v2091, 4294901760
        %2093 = vmatmul.mubr.f32.gmra.mrb[0].mxu0 %v2092
        %v2094 = vpop.f32.mrb[0].mxu0
        %v2095 = vadd.f32 %v1969, %v2094
        %v2096 = vpop.f32.mrb[0].mxu0
        %2097 = vmatprep.mubr.f32.mxu0 0.0
        %v2098 = vand.u32 %v1598, 4294901760
        %v2099 = vsub.f32 %v1598, %v2098
        %v2100 = vand.u32 %v2099, 4294901760
        %2101 = vmatmul.mubr.f32.gmra.mrb[0].mxu0 %v2100
        %v2102 = vpop.f32.mrb[0].mxu0
        %v2103 = vadd.f32 %v1976, %v2102
        %v2104 = vpop.f32.mrb[0].mxu0
        %2105 = vmatprep.mubr.f32.mxu0 0.0
        %v2106 = vand.u32 %v1601, 4294901760
        %v2107 = vsub.f32 %v1601, %v2106
        %v2108 = vand.u32 %v2107, 4294901760
        %2109 = vmatmul.mubr.f32.gmra.mrb[0].mxu0 %v2108
        %v2110 = vpop.f32.mrb[0].mxu0
        %v2111 = vadd.f32 %v1983, %v2110
        %v2112 = vpop.f32.mrb[0].mxu0
        %2113 = vmatprep.mubr.f32.mxu0 0.0
        %v2114 = vand.u32 %v1604, 4294901760
        %v2115 = vsub.f32 %v1604, %v2114
        %v2116 = vand.u32 %v2115, 4294901760
        %2117 = vmatmul.mubr.f32.gmra.mrb[0].mxu0 %v2116
        %v2118 = vpop.f32.mrb[0].mxu0
        %v2119 = vadd.f32 %v1990, %v2118
        %v2120 = vpop.f32.mrb[0].mxu0
        %2121 = vmatprep.mubr.f32.mxu0 0.0
        %v2122 = vand.u32 %v1607, 4294901760
        %v2123 = vsub.f32 %v1607, %v2122
        %v2124 = vand.u32 %v2123, 4294901760
        %2125 = vmatmul.mubr.f32.gmra.mrb[0].mxu0 %v2124
        %v2126 = vpop.f32.mrb[0].mxu0
        %v2127 = vadd.f32 %v1997, %v2126
        %v2128 = vpop.f32.mrb[0].mxu0
        %2129 = vmatprep.mubr.f32.mxu0 0.0
        %v2130 = vand.u32 %v1610, 4294901760
        %v2131 = vsub.f32 %v1610, %v2130
        %v2132 = vand.u32 %v2131, 4294901760
        %2133 = vmatmul.mubr.f32.gmra.mrb[0].mxu0 %v2132
        %v2134 = vpop.f32.mrb[0].mxu0
        %v2135 = vadd.f32 %v2004, %v2134
        %v2136 = vpop.f32.mrb[0].mxu0
        %2137 = vdwg.mxu0
        %2138 = vmatprep.subr.mxu0 0.0
        %v2139 = vand.u32 %v301, 4294901760
        %v2140 = vsub.f32 %v301, %v2139
        %v2141 = vand.u32 %v2140, 4294901760
        %2142 = vmatpush1.msra.mxu0 %v2141
        %2143 = vmatprep.subr.mxu0 0.0
        %v2144 = vand.u32 %v302, 4294901760
        %v2145 = vsub.f32 %v302, %v2144
        %v2146 = vand.u32 %v2145, 4294901760
        %2147 = vmatpush1.msra.mxu0 %v2146
        %2148 = vmatprep.subr.mxu0 0.0
        %2149 = vmatpush1.msra.mxu0 0.0
        %2150 = vmatprep.subr.mxu0 0.0
        %2151 = vmatpush1.msra.mxu0 0.0
        %2152 = vmatprep.subr.mxu0 0.0
        %2153 = vmatpush1.msra.mxu0 0.0
        %2154 = vmatprep.subr.mxu0 0.0
        %2155 = vmatpush1.msra.mxu0 0.0
        %2156 = vmatprep.subr.mxu0 0.0
        %2157 = vmatpush1.msra.mxu0 0.0
        %2158 = vmatprep.subr.mxu0 0.0
        %2159 = vmatpush1.msra.mxu0 0.0
        %2160 = vmatprep.subr.mxu0 0.0
        %2161 = vmatpush1.msra.mxu0 0.0
        %2162 = vmatprep.subr.mxu0 0.0
        %2163 = vmatpush1.msra.mxu0 0.0
        %2164 = vmatprep.subr.mxu0 0.0
        %2165 = vmatpush1.msra.mxu0 0.0
        %2166 = vmatprep.subr.mxu0 0.0
        %2167 = vmatpush1.msra.mxu0 0.0
        %2168 = vmatprep.subr.mxu0 0.0
        %2169 = vmatpush1.msra.mxu0 0.0
        %2170 = vmatprep.subr.mxu0 0.0
        %2171 = vmatpush1.msra.mxu0 0.0
        %2172 = vmatprep.subr.mxu0 0.0
        %2173 = vmatpush1.msra.mxu0 0.0
        %2174 = vmatprep.subr.mxu0 0.0
        %2175 = vmatpush1.msra.mxu0 0.0
        %2176 = vmatprep.subr.mxu0 0.0
        %2177 = vmatpush1.msra.mxu0 0.0
        %2178 = vmatprep.subr.mxu0 0.0
        %2179 = vmatpush1.msra.mxu0 0.0
        %2180 = vmatprep.subr.mxu0 0.0
        %2181 = vmatpush1.msra.mxu0 0.0
        %2182 = vmatprep.subr.mxu0 0.0
        %2183 = vmatpush1.msra.mxu0 0.0
        %2184 = vmatprep.subr.mxu0 0.0
        %2185 = vmatpush1.msra.mxu0 0.0
        %2186 = vmatprep.subr.mxu0 0.0
        %2187 = vmatpush1.msra.mxu0 0.0
        %2188 = vmatprep.subr.mxu0 0.0
        %2189 = vmatpush1.msra.mxu0 0.0
        %2190 = vmatprep.subr.mxu0 0.0
        %2191 = vmatpush1.msra.mxu0 0.0
        %2192 = vmatprep.subr.mxu0 0.0
        %2193 = vmatpush1.msra.mxu0 0.0
        %2194 = vmatprep.subr.mxu0 0.0
        %2195 = vmatpush1.msra.mxu0 0.0
        %2196 = vmatprep.subr.mxu0 0.0
        %2197 = vmatpush1.msra.mxu0 0.0
        %2198 = vmatprep.subr.mxu0 0.0
        %2199 = vmatpush1.msra.mxu0 0.0
        %2200 = vmatprep.subr.mxu0 0.0
        %2201 = vmatpush1.msra.mxu0 0.0
        %2202 = vmatprep.subr.mxu0 0.0
        %2203 = vmatpush1.msra.mxu0 0.0
        %2204 = vmatprep.subr.mxu0 0.0
        %2205 = vmatpush1.msra.mxu0 0.0
        %2206 = vmatprep.subr.mxu0 0.0
        %2207 = vmatpush1.msra.mxu0 0.0
        %2208 = vmatprep.mubr.f32.mxu0 0.0
        %v2209 = vand.u32 %v1589, 4294901760
        %2210 = vmatmul.mubr.f32.gmra.mrb[0].mxu0 %v2209
        %v2211 = vpop.f32.mrb[0].mxu0
        %v2212 = vadd.f32 %v2079, %v2211
        %v2213 = vpop.f32.mrb[0].mxu0
        %2214 = vmatprep.mubr.f32.mxu0 0.0
        %v2215 = vand.u32 %v1592, 4294901760
        %2216 = vmatmul.mubr.f32.gmra.mrb[0].mxu0 %v2215
        %v2217 = vpop.f32.mrb[0].mxu0
        %v2218 = vadd.f32 %v2087, %v2217
        %v2219 = vpop.f32.mrb[0].mxu0
        %2220 = vmatprep.mubr.f32.mxu0 0.0
        %v2221 = vand.u32 %v1595, 4294901760
        %2222 = vmatmul.mubr.f32.gmra.mrb[0].mxu0 %v2221
        %v2223 = vpop.f32.mrb[0].mxu0
        %v2224 = vadd.f32 %v2095, %v2223
        %v2225 = vpop.f32.mrb[0].mxu0
        %2226 = vmatprep.mubr.f32.mxu0 0.0
        %v2227 = vand.u32 %v1598, 4294901760
        %2228 = vmatmul.mubr.f32.gmra.mrb[0].mxu0 %v2227
        %v2229 = vpop.f32.mrb[0].mxu0
        %v2230 = vadd.f32 %v2103, %v2229
        %v2231 = vpop.f32.mrb[0].mxu0
        %2232 = vmatprep.mubr.f32.mxu0 0.0
        %v2233 = vand.u32 %v1601, 4294901760
        %2234 = vmatmul.mubr.f32.gmra.mrb[0].mxu0 %v2233
        %v2235 = vpop.f32.mrb[0].mxu0
        %v2236 = vadd.f32 %v2111, %v2235
        %v2237 = vpop.f32.mrb[0].mxu0
        %2238 = vmatprep.mubr.f32.mxu0 0.0
        %v2239 = vand.u32 %v1604, 4294901760
        %2240 = vmatmul.mubr.f32.gmra.mrb[0].mxu0 %v2239
        %v2241 = vpop.f32.mrb[0].mxu0
        %v2242 = vadd.f32 %v2119, %v2241
        %v2243 = vpop.f32.mrb[0].mxu0
        %2244 = vmatprep.mubr.f32.mxu0 0.0
        %v2245 = vand.u32 %v1607, 4294901760
        %2246 = vmatmul.mubr.f32.gmra.mrb[0].mxu0 %v2245
        %v2247 = vpop.f32.mrb[0].mxu0
        %v2248 = vadd.f32 %v2127, %v2247
        %v2249 = vpop.f32.mrb[0].mxu0
        %2250 = vmatprep.mubr.f32.mxu0 0.0
        %v2251 = vand.u32 %v1610, 4294901760
        %2252 = vmatmul.mubr.f32.gmra.mrb[0].mxu0 %v2251
        %v2253 = vpop.f32.mrb[0].mxu0
        %v2254 = vadd.f32 %v2135, %v2253
        %v2255 = vpop.f32.mrb[0].mxu0
        %2256 = vdwg.mxu0
        %2257 = vmatprep.subr.mxu0 0.0
        %v2258 = vand.u32 %v301, 4294901760
        %2259 = vmatpush1.msra.mxu0 %v2258
        %2260 = vmatprep.subr.mxu0 0.0
        %v2261 = vand.u32 %v302, 4294901760
        %2262 = vmatpush1.msra.mxu0 %v2261
        %2263 = vmatprep.subr.mxu0 0.0
        %2264 = vmatpush1.msra.mxu0 0.0
        %2265 = vmatprep.subr.mxu0 0.0
        %2266 = vmatpush1.msra.mxu0 0.0
        %2267 = vmatprep.subr.mxu0 0.0
        %2268 = vmatpush1.msra.mxu0 0.0
        %2269 = vmatprep.subr.mxu0 0.0
        %2270 = vmatpush1.msra.mxu0 0.0
        %2271 = vmatprep.subr.mxu0 0.0
        %2272 = vmatpush1.msra.mxu0 0.0
        %2273 = vmatprep.subr.mxu0 0.0
        %2274 = vmatpush1.msra.mxu0 0.0
        %2275 = vmatprep.subr.mxu0 0.0
        %2276 = vmatpush1.msra.mxu0 0.0
        %2277 = vmatprep.subr.mxu0 0.0
        %2278 = vmatpush1.msra.mxu0 0.0
        %2279 = vmatprep.subr.mxu0 0.0
        %2280 = vmatpush1.msra.mxu0 0.0
        %2281 = vmatprep.subr.mxu0 0.0
        %2282 = vmatpush1.msra.mxu0 0.0
        %2283 = vmatprep.subr.mxu0 0.0
        %2284 = vmatpush1.msra.mxu0 0.0
        %2285 = vmatprep.subr.mxu0 0.0
        %2286 = vmatpush1.msra.mxu0 0.0
        %2287 = vmatprep.subr.mxu0 0.0
        %2288 = vmatpush1.msra.mxu0 0.0
        %2289 = vmatprep.subr.mxu0 0.0
        %2290 = vmatpush1.msra.mxu0 0.0
        %2291 = vmatprep.subr.mxu0 0.0
        %2292 = vmatpush1.msra.mxu0 0.0
        %2293 = vmatprep.subr.mxu0 0.0
        %2294 = vmatpush1.msra.mxu0 0.0
        %2295 = vmatprep.subr.mxu0 0.0
        %2296 = vmatpush1.msra.mxu0 0.0
        %2297 = vmatprep.subr.mxu0 0.0
        %2298 = vmatpush1.msra.mxu0 0.0
        %2299 = vmatprep.subr.mxu0 0.0
        %2300 = vmatpush1.msra.mxu0 0.0
        %2301 = vmatprep.subr.mxu0 0.0
        %2302 = vmatpush1.msra.mxu0 0.0
        %2303 = vmatprep.subr.mxu0 0.0
        %2304 = vmatpush1.msra.mxu0 0.0
        %2305 = vmatprep.subr.mxu0 0.0
        %2306 = vmatpush1.msra.mxu0 0.0
        %2307 = vmatprep.subr.mxu0 0.0
        %2308 = vmatpush1.msra.mxu0 0.0
        %2309 = vmatprep.subr.mxu0 0.0
        %2310 = vmatpush1.msra.mxu0 0.0
        %2311 = vmatprep.subr.mxu0 0.0
        %2312 = vmatpush1.msra.mxu0 0.0
        %2313 = vmatprep.subr.mxu0 0.0
        %2314 = vmatpush1.msra.mxu0 0.0
        %2315 = vmatprep.subr.mxu0 0.0
        %2316 = vmatpush1.msra.mxu0 0.0
        %2317 = vmatprep.subr.mxu0 0.0
        %2318 = vmatpush1.msra.mxu0 0.0
        %2319 = vmatprep.subr.mxu0 0.0
        %2320 = vmatpush1.msra.mxu0 0.0
        %2321 = vmatprep.subr.mxu0 0.0
        %2322 = vmatpush1.msra.mxu0 0.0
        %2323 = vmatprep.mubr.f32.mxu0 0.0
        %v2324 = vand.u32 %v1589, 4294901760
        %2325 = vmatmul.mubr.f32.gmra.mrb[0].mxu0 %v2324
        %v2326 = vpop.f32.mrb[0].mxu0
        %v2327 = vadd.f32 %v2212, %v2326
        %v2328 = vpop.f32.mrb[0].mxu0
        %2329 = vmatprep.mubr.f32.mxu0 0.0
        %v2330 = vand.u32 %v1592, 4294901760
        %2331 = vmatmul.mubr.f32.gmra.mrb[0].mxu0 %v2330
        %v2332 = vpop.f32.mrb[0].mxu0
        %v2333 = vadd.f32 %v2218, %v2332
        %v2334 = vpop.f32.mrb[0].mxu0
        %2335 = vmatprep.mubr.f32.mxu0 0.0
        %v2336 = vand.u32 %v1595, 4294901760
        %2337 = vmatmul.mubr.f32.gmra.mrb[0].mxu0 %v2336
        %v2338 = vpop.f32.mrb[0].mxu0
        %v2339 = vadd.f32 %v2224, %v2338
        %v2340 = vpop.f32.mrb[0].mxu0
        %2341 = vmatprep.mubr.f32.mxu0 0.0
        %v2342 = vand.u32 %v1598, 4294901760
        %2343 = vmatmul.mubr.f32.gmra.mrb[0].mxu0 %v2342
        %v2344 = vpop.f32.mrb[0].mxu0
        %v2345 = vadd.f32 %v2230, %v2344
        %v2346 = vpop.f32.mrb[0].mxu0
        %2347 = vmatprep.mubr.f32.mxu0 0.0
        %v2348 = vand.u32 %v1601, 4294901760
        %2349 = vmatmul.mubr.f32.gmra.mrb[0].mxu0 %v2348
        %v2350 = vpop.f32.mrb[0].mxu0
        %v2351 = vadd.f32 %v2236, %v2350
        %v2352 = vpop.f32.mrb[0].mxu0
        %2353 = vmatprep.mubr.f32.mxu0 0.0
        %v2354 = vand.u32 %v1604, 4294901760
        %2355 = vmatmul.mubr.f32.gmra.mrb[0].mxu0 %v2354
        %v2356 = vpop.f32.mrb[0].mxu0
        %v2357 = vadd.f32 %v2242, %v2356
        %v2358 = vpop.f32.mrb[0].mxu0
        %2359 = vmatprep.mubr.f32.mxu0 0.0
        %v2360 = vand.u32 %v1607, 4294901760
        %2361 = vmatmul.mubr.f32.gmra.mrb[0].mxu0 %v2360
        %v2362 = vpop.f32.mrb[0].mxu0
        %v2363 = vadd.f32 %v2248, %v2362
        %v2364 = vpop.f32.mrb[0].mxu0
        %2365 = vmatprep.mubr.f32.mxu0 0.0
        %v2366 = vand.u32 %v1610, 4294901760
        %2367 = vmatmul.mubr.f32.gmra.mrb[0].mxu0 %v2366
        %v2368 = vpop.f32.mrb[0].mxu0
        %v2369 = vadd.f32 %v2254, %v2368
        %v2370 = vpop.f32.mrb[0].mxu0
        %2371 = vdwg.mxu0
        %2372 = vst.msk [vmem:[#allocation2] sm:$0xff] %vm1096, %v2327
        %2373 = vst.msk [vmem:[#allocation2 + $0x8] sm:$0xff] %vm1096, %v2333
        %2374 = vst.msk [vmem:[#allocation2 + $0x10] sm:$0xff] %vm1096, %v2339
        %2375 = vst.msk [vmem:[#allocation2 + $0x18] sm:$0xff] %vm1096, %v2345
        %2376 = vst.msk [vmem:[#allocation2 + $0x20] sm:$0xff] %vm1096, %v2351
        %2377 = vst.msk [vmem:[#allocation2 + $0x28] sm:$0xff] %vm1096, %v2357
        %2378 = vst.msk [vmem:[#allocation2 + $0x30] sm:$0xff] %vm1096, %v2363
        %2379 = vst.msk [vmem:[#allocation2 + $0x38] sm:$0xff] %vm1096, %v2369
        loop: start=0, step=1, limit=4
        $region52: #{_lowpass_pair_pallas.1} parent=35 // loop_pre_header
          _
        $region53: #{_lowpass_pair_pallas.1} parent=35 // loop_header
          %s2381 = sphi 0, %s2385
          %p2382 = scmp.ge.s32.totalorder %s2381, 4
        $region54: #{_lowpass_pair_pallas.1} parent=35 // loop_header_branch
          %2384 = sbr.rel (%p2382) target = $region58
        $region55: #{_lowpass_pair_pallas.1} parent=35 // loop_body
          %s2386 = smul.u32 %s2381, 16
          %s2387 = scalar_lea.vmem [#allocation2], %s2386
          %v2388 = vld [vmem:[%s2387] sm:$0xff]
          %v2389 = vld [vmem:[%s2387 + $0x8] sm:$0xff]
          %v2391 = vsel %vm311, %v300, 0
          %2393 = vmatprep.subr.mxu0 0.0
          %v2394 = vand.u32 %v2388, 4294901760
          %2395 = vmatpush1.msra.mxu0 %v2394
          %2396 = vmatprep.subr.mxu0 0.0
          %v2397 = vand.u32 %v2389, 4294901760
          %2398 = vmatpush1.msra.mxu0 %v2397
          %2399 = vmatprep.subr.mxu0 0.0
          %2400 = vmatpush1.msra.mxu0 0.0
          %2401 = vmatprep.subr.mxu0 0.0
          %2402 = vmatpush1.msra.mxu0 0.0
          %2403 = vmatprep.subr.mxu0 0.0
          %2404 = vmatpush1.msra.mxu0 0.0
          %2405 = vmatprep.subr.mxu0 0.0
          %2406 = vmatpush1.msra.mxu0 0.0
          %2407 = vmatprep.subr.mxu0 0.0
          %2408 = vmatpush1.msra.mxu0 0.0
          %2409 = vmatprep.subr.mxu0 0.0
          %2410 = vmatpush1.msra.mxu0 0.0
          %2411 = vmatprep.subr.mxu0 0.0
          %2412 = vmatpush1.msra.mxu0 0.0
          %2413 = vmatprep.subr.mxu0 0.0
          %2414 = vmatpush1.msra.mxu0 0.0
          %2415 = vmatprep.subr.mxu0 0.0
          %2416 = vmatpush1.msra.mxu0 0.0
          %2417 = vmatprep.subr.mxu0 0.0
          %2418 = vmatpush1.msra.mxu0 0.0
          %2419 = vmatprep.subr.mxu0 0.0
          %2420 = vmatpush1.msra.mxu0 0.0
          %2421 = vmatprep.subr.mxu0 0.0
          %2422 = vmatpush1.msra.mxu0 0.0
          %2423 = vmatprep.subr.mxu0 0.0
          %2424 = vmatpush1.msra.mxu0 0.0
          %2425 = vmatprep.subr.mxu0 0.0
          %2426 = vmatpush1.msra.mxu0 0.0
          %2427 = vmatprep.subr.mxu0 0.0
          %2428 = vmatpush1.msra.mxu0 0.0
          %2429 = vmatprep.subr.mxu0 0.0
          %2430 = vmatpush1.msra.mxu0 0.0
          %2431 = vmatprep.subr.mxu0 0.0
          %2432 = vmatpush1.msra.mxu0 0.0
          %2433 = vmatprep.subr.mxu0 0.0
          %2434 = vmatpush1.msra.mxu0 0.0
          %2435 = vmatprep.subr.mxu0 0.0
          %2436 = vmatpush1.msra.mxu0 0.0
          %2437 = vmatprep.subr.mxu0 0.0
          %2438 = vmatpush1.msra.mxu0 0.0
          %2439 = vmatprep.subr.mxu0 0.0
          %2440 = vmatpush1.msra.mxu0 0.0
          %2441 = vmatprep.subr.mxu0 0.0
          %2442 = vmatpush1.msra.mxu0 0.0
          %2443 = vmatprep.subr.mxu0 0.0
          %2444 = vmatpush1.msra.mxu0 0.0
          %2445 = vmatprep.subr.mxu0 0.0
          %2446 = vmatpush1.msra.mxu0 0.0
          %2447 = vmatprep.subr.mxu0 0.0
          %2448 = vmatpush1.msra.mxu0 0.0
          %2449 = vmatprep.subr.mxu0 0.0
          %2450 = vmatpush1.msra.mxu0 0.0
          %2451 = vmatprep.subr.mxu0 0.0
          %2452 = vmatpush1.msra.mxu0 0.0
          %2453 = vmatprep.subr.mxu0 0.0
          %2454 = vmatpush1.msra.mxu0 0.0
          %2455 = vmatprep.subr.mxu0 0.0
          %2456 = vmatpush1.msra.mxu0 0.0
          %2457 = vmatprep.subr.mxu0 0.0
          %2458 = vmatpush1.msra.mxu0 0.0
          %2459 = vmatprep.mubr.f32.mxu0 0.0
          %v2460 = vand.u32 %v2391, 4294901760
          %v2461 = vsub.f32 %v2391, %v2460
          %v2462 = vand.u32 %v2461, 4294901760
          %v2463 = vsub.f32 %v2461, %v2462
          %v2464 = vand.u32 %v2463, 4294901760
          %2465 = vmatmul.mubr.f32.gmra.mrb[0].mxu0 %v2464
          %v2466 = vpop.f32.mrb[0].mxu0
          %v2467 = vadd.f32 0.0, %v2466
          %v2468 = vpop.f32.mrb[0].mxu0
          %2469 = vdwg.mxu0
          %2470 = vmatprep.subr.mxu0 0.0
          %v2471 = vand.u32 %v2388, 4294901760
          %v2472 = vsub.f32 %v2388, %v2471
          %v2473 = vand.u32 %v2472, 4294901760
          %v2474 = vsub.f32 %v2472, %v2473
          %v2475 = vand.u32 %v2474, 4294901760
          %2476 = vmatpush1.msra.mxu0 %v2475
          %2477 = vmatprep.subr.mxu0 0.0
          %v2478 = vand.u32 %v2389, 4294901760
          %v2479 = vsub.f32 %v2389, %v2478
          %v2480 = vand.u32 %v2479, 4294901760
          %v2481 = vsub.f32 %v2479, %v2480
          %v2482 = vand.u32 %v2481, 4294901760
          %2483 = vmatpush1.msra.mxu0 %v2482
          %2484 = vmatprep.subr.mxu0 0.0
          %2485 = vmatpush1.msra.mxu0 0.0
          %2486 = vmatprep.subr.mxu0 0.0
          %2487 = vmatpush1.msra.mxu0 0.0
          %2488 = vmatprep.subr.mxu0 0.0
          %2489 = vmatpush1.msra.mxu0 0.0
          %2490 = vmatprep.subr.mxu0 0.0
          %2491 = vmatpush1.msra.mxu0 0.0
          %2492 = vmatprep.subr.mxu0 0.0
          %2493 = vmatpush1.msra.mxu0 0.0
          %2494 = vmatprep.subr.mxu0 0.0
          %2495 = vmatpush1.msra.mxu0 0.0
          %2496 = vmatprep.subr.mxu0 0.0
          %2497 = vmatpush1.msra.mxu0 0.0
          %2498 = vmatprep.subr.mxu0 0.0
          %2499 = vmatpush1.msra.mxu0 0.0
          %2500 = vmatprep.subr.mxu0 0.0
          %2501 = vmatpush1.msra.mxu0 0.0
          %2502 = vmatprep.subr.mxu0 0.0
          %2503 = vmatpush1.msra.mxu0 0.0
          %2504 = vmatprep.subr.mxu0 0.0
          %2505 = vmatpush1.msra.mxu0 0.0
          %2506 = vmatprep.subr.mxu0 0.0
          %2507 = vmatpush1.msra.mxu0 0.0
          %2508 = vmatprep.subr.mxu0 0.0
          %2509 = vmatpush1.msra.mxu0 0.0
          %2510 = vmatprep.subr.mxu0 0.0
          %2511 = vmatpush1.msra.mxu0 0.0
          %2512 = vmatprep.subr.mxu0 0.0
          %2513 = vmatpush1.msra.mxu0 0.0
          %2514 = vmatprep.subr.mxu0 0.0
          %2515 = vmatpush1.msra.mxu0 0.0
          %2516 = vmatprep.subr.mxu0 0.0
          %2517 = vmatpush1.msra.mxu0 0.0
          %2518 = vmatprep.subr.mxu0 0.0
          %2519 = vmatpush1.msra.mxu0 0.0
          %2520 = vmatprep.subr.mxu0 0.0
          %2521 = vmatpush1.msra.mxu0 0.0
          %2522 = vmatprep.subr.mxu0 0.0
          %2523 = vmatpush1.msra.mxu0 0.0
          %2524 = vmatprep.subr.mxu0 0.0
          %2525 = vmatpush1.msra.mxu0 0.0
          %2526 = vmatprep.subr.mxu0 0.0
          %2527 = vmatpush1.msra.mxu0 0.0
          %2528 = vmatprep.subr.mxu0 0.0
          %2529 = vmatpush1.msra.mxu0 0.0
          %2530 = vmatprep.subr.mxu0 0.0
          %2531 = vmatpush1.msra.mxu0 0.0
          %2532 = vmatprep.subr.mxu0 0.0
          %2533 = vmatpush1.msra.mxu0 0.0
          %2534 = vmatprep.subr.mxu0 0.0
          %2535 = vmatpush1.msra.mxu0 0.0
          %2536 = vmatprep.subr.mxu0 0.0
          %2537 = vmatpush1.msra.mxu0 0.0
          %2538 = vmatprep.subr.mxu0 0.0
          %2539 = vmatpush1.msra.mxu0 0.0
          %2540 = vmatprep.subr.mxu0 0.0
          %2541 = vmatpush1.msra.mxu0 0.0
          %2542 = vmatprep.subr.mxu0 0.0
          %2543 = vmatpush1.msra.mxu0 0.0
          %2544 = vmatprep.mubr.f32.mxu0 0.0
          %v2545 = vand.u32 %v2391, 4294901760
          %2546 = vmatmul.mubr.f32.gmra.mrb[0].mxu0 %v2545
          %v2547 = vpop.f32.mrb[0].mxu0
          %v2548 = vadd.f32 %v2467, %v2547
          %v2549 = vpop.f32.mrb[0].mxu0
          %2550 = vdwg.mxu0
          %2551 = vmatprep.subr.mxu0 0.0
          %v2552 = vand.u32 %v2388, 4294901760
          %v2553 = vsub.f32 %v2388, %v2552
          %2554 = vmatpush1.msra.mxu0 %v2553
          %2555 = vmatprep.subr.mxu0 0.0
          %v2556 = vand.u32 %v2389, 4294901760
          %v2557 = vsub.f32 %v2389, %v2556
          %2558 = vmatpush1.msra.mxu0 %v2557
          %2559 = vmatprep.subr.mxu0 0.0
          %2560 = vmatpush1.msra.mxu0 0.0
          %2561 = vmatprep.subr.mxu0 0.0
          %2562 = vmatpush1.msra.mxu0 0.0
          %2563 = vmatprep.subr.mxu0 0.0
          %2564 = vmatpush1.msra.mxu0 0.0
          %2565 = vmatprep.subr.mxu0 0.0
          %2566 = vmatpush1.msra.mxu0 0.0
          %2567 = vmatprep.subr.mxu0 0.0
          %2568 = vmatpush1.msra.mxu0 0.0
          %2569 = vmatprep.subr.mxu0 0.0
          %2570 = vmatpush1.msra.mxu0 0.0
          %2571 = vmatprep.subr.mxu0 0.0
          %2572 = vmatpush1.msra.mxu0 0.0
          %2573 = vmatprep.subr.mxu0 0.0
          %2574 = vmatpush1.msra.mxu0 0.0
          %2575 = vmatprep.subr.mxu0 0.0
          %2576 = vmatpush1.msra.mxu0 0.0
          %2577 = vmatprep.subr.mxu0 0.0
          %2578 = vmatpush1.msra.mxu0 0.0
          %2579 = vmatprep.subr.mxu0 0.0
          %2580 = vmatpush1.msra.mxu0 0.0
          %2581 = vmatprep.subr.mxu0 0.0
          %2582 = vmatpush1.msra.mxu0 0.0
          %2583 = vmatprep.subr.mxu0 0.0
          %2584 = vmatpush1.msra.mxu0 0.0
          %2585 = vmatprep.subr.mxu0 0.0
          %2586 = vmatpush1.msra.mxu0 0.0
          %2587 = vmatprep.subr.mxu0 0.0
          %2588 = vmatpush1.msra.mxu0 0.0
          %2589 = vmatprep.subr.mxu0 0.0
          %2590 = vmatpush1.msra.mxu0 0.0
          %2591 = vmatprep.subr.mxu0 0.0
          %2592 = vmatpush1.msra.mxu0 0.0
          %2593 = vmatprep.subr.mxu0 0.0
          %2594 = vmatpush1.msra.mxu0 0.0
          %2595 = vmatprep.subr.mxu0 0.0
          %2596 = vmatpush1.msra.mxu0 0.0
          %2597 = vmatprep.subr.mxu0 0.0
          %2598 = vmatpush1.msra.mxu0 0.0
          %2599 = vmatprep.subr.mxu0 0.0
          %2600 = vmatpush1.msra.mxu0 0.0
          %2601 = vmatprep.subr.mxu0 0.0
          %2602 = vmatpush1.msra.mxu0 0.0
          %2603 = vmatprep.subr.mxu0 0.0
          %2604 = vmatpush1.msra.mxu0 0.0
          %2605 = vmatprep.subr.mxu0 0.0
          %2606 = vmatpush1.msra.mxu0 0.0
          %2607 = vmatprep.subr.mxu0 0.0
          %2608 = vmatpush1.msra.mxu0 0.0
          %2609 = vmatprep.subr.mxu0 0.0
          %2610 = vmatpush1.msra.mxu0 0.0
          %2611 = vmatprep.subr.mxu0 0.0
          %2612 = vmatpush1.msra.mxu0 0.0
          %2613 = vmatprep.subr.mxu0 0.0
          %2614 = vmatpush1.msra.mxu0 0.0
          %2615 = vmatprep.subr.mxu0 0.0
          %2616 = vmatpush1.msra.mxu0 0.0
          %2617 = vmatprep.subr.mxu0 0.0
          %2618 = vmatpush1.msra.mxu0 0.0
          %2619 = vmatprep.mubr.f32.mxu0 0.0
          %v2620 = vand.u32 %v2391, 4294901760
          %v2621 = vsub.f32 %v2391, %v2620
          %2622 = vmatmul.mubr.f32.gmra.mrb[0].mxu0 %v2621
          %v2623 = vpop.f32.mrb[0].mxu0
          %v2624 = vadd.f32 %v2548, %v2623
          %v2625 = vpop.f32.mrb[0].mxu0
          %2626 = vdwg.mxu0
          %2627 = vmatprep.subr.mxu0 0.0
          %v2628 = vand.u32 %v2388, 4294901760
          %2629 = vmatpush1.msra.mxu0 %v2628
          %2630 = vmatprep.subr.mxu0 0.0
          %v2631 = vand.u32 %v2389, 4294901760
          %2632 = vmatpush1.msra.mxu0 %v2631
          %2633 = vmatprep.subr.mxu0 0.0
          %2634 = vmatpush1.msra.mxu0 0.0
          %2635 = vmatprep.subr.mxu0 0.0
          %2636 = vmatpush1.msra.mxu0 0.0
          %2637 = vmatprep.subr.mxu0 0.0
          %2638 = vmatpush1.msra.mxu0 0.0
          %2639 = vmatprep.subr.mxu0 0.0
          %2640 = vmatpush1.msra.mxu0 0.0
          %2641 = vmatprep.subr.mxu0 0.0
          %2642 = vmatpush1.msra.mxu0 0.0
          %2643 = vmatprep.subr.mxu0 0.0
          %2644 = vmatpush1.msra.mxu0 0.0
          %2645 = vmatprep.subr.mxu0 0.0
          %2646 = vmatpush1.msra.mxu0 0.0
          %2647 = vmatprep.subr.mxu0 0.0
          %2648 = vmatpush1.msra.mxu0 0.0
          %2649 = vmatprep.subr.mxu0 0.0
          %2650 = vmatpush1.msra.mxu0 0.0
          %2651 = vmatprep.subr.mxu0 0.0
          %2652 = vmatpush1.msra.mxu0 0.0
          %2653 = vmatprep.subr.mxu0 0.0
          %2654 = vmatpush1.msra.mxu0 0.0
          %2655 = vmatprep.subr.mxu0 0.0
          %2656 = vmatpush1.msra.mxu0 0.0
          %2657 = vmatprep.subr.mxu0 0.0
          %2658 = vmatpush1.msra.mxu0 0.0
          %2659 = vmatprep.subr.mxu0 0.0
          %2660 = vmatpush1.msra.mxu0 0.0
          %2661 = vmatprep.subr.mxu0 0.0
          %2662 = vmatpush1.msra.mxu0 0.0
          %2663 = vmatprep.subr.mxu0 0.0
          %2664 = vmatpush1.msra.mxu0 0.0
          %2665 = vmatprep.subr.mxu0 0.0
          %2666 = vmatpush1.msra.mxu0 0.0
          %2667 = vmatprep.subr.mxu0 0.0
          %2668 = vmatpush1.msra.mxu0 0.0
          %2669 = vmatprep.subr.mxu0 0.0
          %2670 = vmatpush1.msra.mxu0 0.0
          %2671 = vmatprep.subr.mxu0 0.0
          %2672 = vmatpush1.msra.mxu0 0.0
          %2673 = vmatprep.subr.mxu0 0.0
          %2674 = vmatpush1.msra.mxu0 0.0
          %2675 = vmatprep.subr.mxu0 0.0
          %2676 = vmatpush1.msra.mxu0 0.0
          %2677 = vmatprep.subr.mxu0 0.0
          %2678 = vmatpush1.msra.mxu0 0.0
          %2679 = vmatprep.subr.mxu0 0.0
          %2680 = vmatpush1.msra.mxu0 0.0
          %2681 = vmatprep.subr.mxu0 0.0
          %2682 = vmatpush1.msra.mxu0 0.0
          %2683 = vmatprep.subr.mxu0 0.0
          %2684 = vmatpush1.msra.mxu0 0.0
          %2685 = vmatprep.subr.mxu0 0.0
          %2686 = vmatpush1.msra.mxu0 0.0
          %2687 = vmatprep.subr.mxu0 0.0
          %2688 = vmatpush1.msra.mxu0 0.0
          %2689 = vmatprep.subr.mxu0 0.0
          %2690 = vmatpush1.msra.mxu0 0.0
          %2691 = vmatprep.subr.mxu0 0.0
          %2692 = vmatpush1.msra.mxu0 0.0
          %2693 = vmatprep.mubr.f32.mxu0 0.0
          %v2694 = vand.u32 %v2391, 4294901760
          %v2695 = vsub.f32 %v2391, %v2694
          %v2696 = vand.u32 %v2695, 4294901760
          %2697 = vmatmul.mubr.f32.gmra.mrb[0].mxu0 %v2696
          %v2698 = vpop.f32.mrb[0].mxu0
          %v2699 = vadd.f32 %v2624, %v2698
          %v2700 = vpop.f32.mrb[0].mxu0
          %2701 = vdwg.mxu0
          %2702 = vmatprep.subr.mxu0 0.0
          %v2703 = vand.u32 %v2388, 4294901760
          %v2704 = vsub.f32 %v2388, %v2703
          %v2705 = vand.u32 %v2704, 4294901760
          %2706 = vmatpush1.msra.mxu0 %v2705
          %2707 = vmatprep.subr.mxu0 0.0
          %v2708 = vand.u32 %v2389, 4294901760
          %v2709 = vsub.f32 %v2389, %v2708
          %v2710 = vand.u32 %v2709, 4294901760
          %2711 = vmatpush1.msra.mxu0 %v2710
          %2712 = vmatprep.subr.mxu0 0.0
          %2713 = vmatpush1.msra.mxu0 0.0
          %2714 = vmatprep.subr.mxu0 0.0
          %2715 = vmatpush1.msra.mxu0 0.0
          %2716 = vmatprep.subr.mxu0 0.0
          %2717 = vmatpush1.msra.mxu0 0.0
          %2718 = vmatprep.subr.mxu0 0.0
          %2719 = vmatpush1.msra.mxu0 0.0
          %2720 = vmatprep.subr.mxu0 0.0
          %2721 = vmatpush1.msra.mxu0 0.0
          %2722 = vmatprep.subr.mxu0 0.0
          %2723 = vmatpush1.msra.mxu0 0.0
          %2724 = vmatprep.subr.mxu0 0.0
          %2725 = vmatpush1.msra.mxu0 0.0
          %2726 = vmatprep.subr.mxu0 0.0
          %2727 = vmatpush1.msra.mxu0 0.0
          %2728 = vmatprep.subr.mxu0 0.0
          %2729 = vmatpush1.msra.mxu0 0.0
          %2730 = vmatprep.subr.mxu0 0.0
          %2731 = vmatpush1.msra.mxu0 0.0
          %2732 = vmatprep.subr.mxu0 0.0
          %2733 = vmatpush1.msra.mxu0 0.0
          %2734 = vmatprep.subr.mxu0 0.0
          %2735 = vmatpush1.msra.mxu0 0.0
          %2736 = vmatprep.subr.mxu0 0.0
          %2737 = vmatpush1.msra.mxu0 0.0
          %2738 = vmatprep.subr.mxu0 0.0
          %2739 = vmatpush1.msra.mxu0 0.0
          %2740 = vmatprep.subr.mxu0 0.0
          %2741 = vmatpush1.msra.mxu0 0.0
          %2742 = vmatprep.subr.mxu0 0.0
          %2743 = vmatpush1.msra.mxu0 0.0
          %2744 = vmatprep.subr.mxu0 0.0
          %2745 = vmatpush1.msra.mxu0 0.0
          %2746 = vmatprep.subr.mxu0 0.0
          %2747 = vmatpush1.msra.mxu0 0.0
          %2748 = vmatprep.subr.mxu0 0.0
          %2749 = vmatpush1.msra.mxu0 0.0
          %2750 = vmatprep.subr.mxu0 0.0
          %2751 = vmatpush1.msra.mxu0 0.0
          %2752 = vmatprep.subr.mxu0 0.0
          %2753 = vmatpush1.msra.mxu0 0.0
          %2754 = vmatprep.subr.mxu0 0.0
          %2755 = vmatpush1.msra.mxu0 0.0
          %2756 = vmatprep.subr.mxu0 0.0
          %2757 = vmatpush1.msra.mxu0 0.0
          %2758 = vmatprep.subr.mxu0 0.0
          %2759 = vmatpush1.msra.mxu0 0.0
          %2760 = vmatprep.subr.mxu0 0.0
          %2761 = vmatpush1.msra.mxu0 0.0
          %2762 = vmatprep.subr.mxu0 0.0
          %2763 = vmatpush1.msra.mxu0 0.0
          %2764 = vmatprep.subr.mxu0 0.0
          %2765 = vmatpush1.msra.mxu0 0.0
          %2766 = vmatprep.subr.mxu0 0.0
          %2767 = vmatpush1.msra.mxu0 0.0
          %2768 = vmatprep.subr.mxu0 0.0
          %2769 = vmatpush1.msra.mxu0 0.0
          %2770 = vmatprep.subr.mxu0 0.0
          %2771 = vmatpush1.msra.mxu0 0.0
          %2772 = vmatprep.mubr.f32.mxu0 0.0
          %v2773 = vand.u32 %v2391, 4294901760
          %2774 = vmatmul.mubr.f32.gmra.mrb[0].mxu0 %v2773
          %v2775 = vpop.f32.mrb[0].mxu0
          %v2776 = vadd.f32 %v2699, %v2775
          %v2777 = vpop.f32.mrb[0].mxu0
          %2778 = vdwg.mxu0
          %2779 = vmatprep.subr.mxu0 0.0
          %v2780 = vand.u32 %v2388, 4294901760
          %2781 = vmatpush1.msra.mxu0 %v2780
          %2782 = vmatprep.subr.mxu0 0.0
          %v2783 = vand.u32 %v2389, 4294901760
          %2784 = vmatpush1.msra.mxu0 %v2783
          %2785 = vmatprep.subr.mxu0 0.0
          %2786 = vmatpush1.msra.mxu0 0.0
          %2787 = vmatprep.subr.mxu0 0.0
          %2788 = vmatpush1.msra.mxu0 0.0
          %2789 = vmatprep.subr.mxu0 0.0
          %2790 = vmatpush1.msra.mxu0 0.0
          %2791 = vmatprep.subr.mxu0 0.0
          %2792 = vmatpush1.msra.mxu0 0.0
          %2793 = vmatprep.subr.mxu0 0.0
          %2794 = vmatpush1.msra.mxu0 0.0
          %2795 = vmatprep.subr.mxu0 0.0
          %2796 = vmatpush1.msra.mxu0 0.0
          %2797 = vmatprep.subr.mxu0 0.0
          %2798 = vmatpush1.msra.mxu0 0.0
          %2799 = vmatprep.subr.mxu0 0.0
          %2800 = vmatpush1.msra.mxu0 0.0
          %2801 = vmatprep.subr.mxu0 0.0
          %2802 = vmatpush1.msra.mxu0 0.0
          %2803 = vmatprep.subr.mxu0 0.0
          %2804 = vmatpush1.msra.mxu0 0.0
          %2805 = vmatprep.subr.mxu0 0.0
          %2806 = vmatpush1.msra.mxu0 0.0
          %2807 = vmatprep.subr.mxu0 0.0
          %2808 = vmatpush1.msra.mxu0 0.0
          %2809 = vmatprep.subr.mxu0 0.0
          %2810 = vmatpush1.msra.mxu0 0.0
          %2811 = vmatprep.subr.mxu0 0.0
          %2812 = vmatpush1.msra.mxu0 0.0
          %2813 = vmatprep.subr.mxu0 0.0
          %2814 = vmatpush1.msra.mxu0 0.0
          %2815 = vmatprep.subr.mxu0 0.0
          %2816 = vmatpush1.msra.mxu0 0.0
          %2817 = vmatprep.subr.mxu0 0.0
          %2818 = vmatpush1.msra.mxu0 0.0
          %2819 = vmatprep.subr.mxu0 0.0
          %2820 = vmatpush1.msra.mxu0 0.0
          %2821 = vmatprep.subr.mxu0 0.0
          %2822 = vmatpush1.msra.mxu0 0.0
          %2823 = vmatprep.subr.mxu0 0.0
          %2824 = vmatpush1.msra.mxu0 0.0
          %2825 = vmatprep.subr.mxu0 0.0
          %2826 = vmatpush1.msra.mxu0 0.0
          %2827 = vmatprep.subr.mxu0 0.0
          %2828 = vmatpush1.msra.mxu0 0.0
          %2829 = vmatprep.subr.mxu0 0.0
          %2830 = vmatpush1.msra.mxu0 0.0
          %2831 = vmatprep.subr.mxu0 0.0
          %2832 = vmatpush1.msra.mxu0 0.0
          %2833 = vmatprep.subr.mxu0 0.0
          %2834 = vmatpush1.msra.mxu0 0.0
          %2835 = vmatprep.subr.mxu0 0.0
          %2836 = vmatpush1.msra.mxu0 0.0
          %2837 = vmatprep.subr.mxu0 0.0
          %2838 = vmatpush1.msra.mxu0 0.0
          %2839 = vmatprep.subr.mxu0 0.0
          %2840 = vmatpush1.msra.mxu0 0.0
          %2841 = vmatprep.subr.mxu0 0.0
          %2842 = vmatpush1.msra.mxu0 0.0
          %2843 = vmatprep.subr.mxu0 0.0
          %2844 = vmatpush1.msra.mxu0 0.0
          %2845 = vmatprep.mubr.f32.mxu0 0.0
          %v2846 = vand.u32 %v2391, 4294901760
          %2847 = vmatmul.mubr.f32.gmra.mrb[0].mxu0 %v2846
          %v2848 = vpop.f32.mrb[0].mxu0
          %v2849 = vadd.f32 %v2776, %v2848
          %v2850 = vpop.f32.mrb[0].mxu0
          %2851 = vdwg.mxu0
          %s2852 = smul.u32 %s2381, 8
          %s2853 = scalar_lea.vmem %s295, %s2852 [#allocation9]
          %2854 = vst.msk [vmem:[%s2853] sm:$0xff] %vm1096, %v2849
        $region56: #{_lowpass_pair_pallas.1} parent=35 // loop_footer
          %s2385 = sadd.s32 1, %s2381
        $region57: #{_lowpass_pair_pallas.1} parent=35 // loop_footer_branch
          %2380 = sbr.rel target = $region53
        $region58: #{_lowpass_pair_pallas.1} parent=35 // loop_exit
          _
        %s2855 = sand.u32 %s131, 1
        %s2856 = scalar_lea.sflag [#allocation5], %s2855
        %s2857 = sand.u32 %s131, 1
        %s2858 = smul.addr %s2857, 32
        %s2859 = scalar_lea.vmem [#allocation8], %s2858
        %s2860 = sand.u32 %s157, 1
        %s2861 = scalar_lea.sflag [#allocation10], %s2860
        %s2862 = sand.u32 %s157, 1
        %s2863 = smul.addr %s2862, 32
        %s2864 = scalar_lea.vmem [#allocation9], %s2863
        // Predicated region
        $region59: #{_lowpass_pair_pallas.1} parent=35 // pred_check
          %p2865 = pneg %p141
        $region60: #{_lowpass_pair_pallas.1} parent=35 // pred_check_branch
          %2867 = sbr.rel (%p2865) target = $region62
        $region61: #{_lowpass_pair_pallas.1} parent=35 // pred_region
          %s2868 = smul.u32 4, %s29
          %s2870 = ssub.s32 512, 512
          %2871 = vsyncadd %s2856, %s2870
          %s2872 = smul.addr %s2868, 128
          %s2873 = scalar_lea.hbm %s4, %s2872
          %s2874 = sshll.u32 %s2859, 4
          %s2875 = int_to_ptr.vmem [resolvable:$true] %s2874
          %2880 = dma.vmem_to_hbm [thread:$0]  %s2875, 512, %s2873, %s2856, 128, 128, 8
        $region62: #{_lowpass_pair_pallas.1} parent=35 // pred_fallthru
          _
        // Predicated region
        $region63: #{_lowpass_pair_pallas.1} parent=35 // pred_check
          %p2881 = pneg %p167
        $region64: #{_lowpass_pair_pallas.1} parent=35 // pred_check_branch
          %2883 = sbr.rel (%p2881) target = $region66
        $region65: #{_lowpass_pair_pallas.1} parent=35 // pred_region
          %s2884 = smul.u32 4, %s29
          %s2886 = ssub.s32 512, 512
          %2887 = vsyncadd %s2861, %s2886
          %s2888 = smul.addr %s2884, 128
          %s2889 = scalar_lea.hbm %s5, %s2888
          %s2890 = sshll.u32 %s2864, 4
          %s2891 = int_to_ptr.vmem [resolvable:$true] %s2890
          %2896 = dma.vmem_to_hbm [thread:$0]  %s2891, 512, %s2889, %s2861, 128, 128, 8
        $region66: #{_lowpass_pair_pallas.1} parent=35 // pred_fallthru
          _
      $region36: #{_lowpass_pair_pallas.1} parent=5 // pred_fallthru
        _
      %p2897 = scmp.le.s32.totalorder 2, %s24
      // Predicated region
      $region67: #{_lowpass_pair_pallas.1} parent=5 // pred_check
        %p2898 = pneg %p2897
      $region68: #{_lowpass_pair_pallas.1} parent=5 // pred_check_branch
        %2900 = sbr.rel (%p2898) target = $region70
      $region69: #{_lowpass_pair_pallas.1} parent=5 // pred_region
        %s2901 = ssub.s32 %s24, 2
        // Predicated region
        $region71: #{_lowpass_pair_pallas.1} parent=69 // pred_check
          %p2902 = pneg %p147
        $region72: #{_lowpass_pair_pallas.1} parent=69 // pred_check_branch
          %2904 = sbr.rel (%p2902) target = $region74
        $region73: #{_lowpass_pair_pallas.1} parent=69 // pred_region
          %s2905 = sand.u32 %s132, 1
          %s2906 = scalar_lea.sflag [#allocation5], %s2905
          %s2907 = sand.u32 %s132, 1
          %s2908 = smul.addr %s2907, 32
          %s2909 = scalar_lea.vmem [#allocation8], %s2908
          %2910 = dma.done %s2906, 512
        $region74: #{_lowpass_pair_pallas.1} parent=69 // pred_fallthru
          _
        // Predicated region
        $region75: #{_lowpass_pair_pallas.1} parent=69 // pred_check
          %p2911 = pneg %p173
        $region76: #{_lowpass_pair_pallas.1} parent=69 // pred_check_branch
          %2913 = sbr.rel (%p2911) target = $region78
        $region77: #{_lowpass_pair_pallas.1} parent=69 // pred_region
          %s2914 = sand.u32 %s158, 1
          %s2915 = scalar_lea.sflag [#allocation10], %s2914
          %s2916 = sand.u32 %s158, 1
          %s2917 = smul.addr %s2916, 32
          %s2918 = scalar_lea.vmem [#allocation9], %s2917
          %2919 = dma.done %s2915, 512
        $region78: #{_lowpass_pair_pallas.1} parent=69 // pred_fallthru
          _
      $region70: #{_lowpass_pair_pallas.1} parent=5 // pred_fallthru
        _
    $region6: #{_lowpass_pair_pallas.1} parent=1 // loop_footer
      %s28 = sadd.s32 1, %s24
    $region7: #{_lowpass_pair_pallas.1} parent=1 // loop_footer_branch
      %23 = sbr.rel target = $region3
    $region8: #{_lowpass_pair_pallas.1} parent=1 // loop_exit
      _
    %2920 = vsyncpa [#allocation4], 1
    %s2921 = scalar_lea.sflag [#allocation4], 1
    %2922 = vsyncpa %s2921, 1
    %2923 = vsyncpa [#allocation7], 1
    %s2924 = scalar_lea.sflag [#allocation7], 1
    %2925 = vsyncpa %s2924, 1
    %2926 = vsyncpa [#allocation5], 1
    %s2927 = scalar_lea.sflag [#allocation5], 1
    %2928 = vsyncpa %s2927, 1
    %2929 = vsyncpa [#allocation10], 1
    %s2930 = scalar_lea.sflag [#allocation10], 1
    %2931 = vsyncpa %s2930, 1

</llo_original>
